<compile_context>
chip_gen: v7x
topology: tpu7x:2x2x1
jax: 0.10.0
libtpu: 0.0.40
codegen_flags: <defaults>
</compile_context>

<pallas_src>
import functools

import jax
import jax.numpy as jnp
from jax.experimental import pallas as pl
from jax.experimental.pallas import tpu as pltpu

# ---------------- block_args / global_params (synthetic, small) --------------
BATCH = 2
IN_CH = 4              # block_args.input_filters
OUT_CH = 4             # block_args.output_filters  (== IN_CH -> id_skip path taken)
EXPAND = 6             # block_args.expand_ratio
KSIZE = 3              # block_args.kernel_size
STRIDE = 1             # block_args.stride (stride 1 + equal filters -> skip add)
SE_RATIO = 0.25        # block_args.se_ratio
H = W = 16             # spatial size
BN_EPS = 1e-3          # global_params.batch_norm_epsilon

MID = IN_CH * EXPAND                       # oup = 24 (expanded channels)
SQZ = max(1, int(IN_CH * SE_RATIO))        # num_squeezed_channels = 1


# ----------------------------- fused Pallas kernel ----------------------------
def _mbconv_kernel(x_ref, w_exp_ref, s0_ref, b0_ref,
                   w_dw_ref, mask_ref, s1_ref, b1_ref,
                   w_se1_ref, b_se1_ref, w_se2t_ref, b_se2_ref,
                   w_proj_ref, s2_ref, b2_ref, o_ref, *, k, h, w):
    """One batch element of MBConv, all intermediates resident in VMEM/vregs."""
    hw = h * w
    x = x_ref[0]                                        # (IN_CH, HW), lane-dense
    in_ch = x.shape[0]

    # ---- expand 1x1 conv + bn0 + swish: IN_CH-tap VPU broadcast-MAC ---------
    w_exp = w_exp_ref[...]                              # (MID, IN_CH)
    hexp = w_exp[:, 0:1] * x[0:1, :]
    for c in range(1, in_ch):
        hexp = hexp + w_exp[:, c:c + 1] * x[c:c + 1, :]  # (MID, HW)
    hexp = hexp * s0_ref[...] + b0_ref[...]
    hexp = hexp * jax.nn.sigmoid(hexp)

    # ---- depthwise kxk conv (SAME, stride 1) + bn1 + swish ------------------
    # Tap (di, dj) == lane rotation of the flat HW axis by (di-1)*W + (dj-1)
    # (two-slice concat == the lane roll suggested in review), with a
    # precomputed 0/1 boundary mask replacing explicit zero padding.
    wdw = w_dw_ref[...]                                 # (MID, k*k)
    msk = mask_ref[...]                                 # (k*k, HW)
    acc = jnp.zeros_like(hexp)
    for di in range(k):
        for dj in range(k):
            t = di * k + dj
            sh = ((di - k // 2) * w + (dj - k // 2)) % hw
            if sh == 0:
                shifted = hexp
            else:   # shifted[:, p] = hexp[:, (p + off) % hw]
                shifted = jnp.concatenate([hexp[:, sh:], hexp[:, :sh]], axis=1)
            acc = acc + shifted * msk[t:t + 1, :] * wdw[:, t:t + 1]
    hdw = acc * s1_ref[...] + b1_ref[...]
    hdw = hdw * jax.nn.sigmoid(hdw)                     # (MID, HW)

    # ---- squeeze-excite: pure VPU/XLU reductions (channels too small for MXU)
    pooled = jnp.sum(hdw, axis=1, keepdims=True) * (1.0 / hw)                      # (MID, 1)
    s = jnp.sum(w_se1_ref[...] * pooled, axis=0, keepdims=True) + b_se1_ref[...]   # (1, SQZ)
    s = s * jax.nn.sigmoid(s)
    g = jnp.sum(w_se2t_ref[...] * s, axis=1, keepdims=True) + b_se2_ref[...]       # (MID, 1)
    g = jax.nn.sigmoid(g)

    # ---- SE gate + project 1x1 (MXU, lane-dense HW) + bn2 + identity skip ---
    y = jnp.dot(w_proj_ref[...], hdw * g, preferred_element_type=jnp.float32)      # (OUT_CH, HW)
    y = y * s2_ref[...] + b2_ref[...]
    o_ref[0] = y + x                                    # id-skip (stride 1, inp == out filters)


def _build_dw_masks(k, h, w):
    """Per-tap 0/1 mask: 1 where the SAME-padded source pixel is inside the
    image (kills the lane-roll wrap-around at row edges / image border)."""
    hh = jnp.arange(h).reshape(h, 1)
    ww = jnp.arange(w).reshape(1, w)
    rows = []
    for di in range(k):
        for dj in range(k):
            sh_ = hh + (di - k // 2)
            sw_ = ww + (dj - k // 2)
            ok = (sh_ >= 0) & (sh_ < h) & (sw_ >= 0) & (sw_ < w)
            rows.append(ok.reshape(h * w))
    return jnp.stack(rows, axis=0).astype(jnp.float32)   # (k*k, h*w)


# --------------------------------- wrapper -------------------------------------
def mbconv_forward(x_nchw, p):
    n, c, h, w = x_nchw.shape
    assert (c, h, w) == (IN_CH, H, W)
    hw = h * w
    x3 = x_nchw.reshape(n, IN_CH, hw).astype(jnp.float32)     # NCHW flat; no transpose

    # one-off relayout of the tiny parameters into channels-first columns
    w_exp_t = p["w_exp"].T                                     # (MID, IN_CH)
    s0, b0 = p["bn0_scale"].reshape(MID, 1), p["bn0_bias"].reshape(MID, 1)
    w_dw_t = p["w_dw"].reshape(KSIZE * KSIZE, MID).T           # (MID, K*K)
    s1, b1 = p["bn1_scale"].reshape(MID, 1), p["bn1_bias"].reshape(MID, 1)
    w_se2t = p["w_se2"].T                                      # (MID, SQZ)
    b_se2c = p["b_se2"].reshape(MID, 1)
    w_proj_t = p["w_proj"].T                                   # (OUT_CH, MID)
    s2, b2 = p["bn2_scale"].reshape(OUT_CH, 1), p["bn2_bias"].reshape(OUT_CH, 1)
    mask = _build_dw_masks(KSIZE, h, w)                        # (K*K, HW)

    def bcast(shape):
        return pl.BlockSpec(shape, lambda b, _r=len(shape): (0,) * _r)

    out = pl.pallas_call(
        functools.partial(_mbconv_kernel, k=KSIZE, h=h, w=w),
        out_shape=jax.ShapeDtypeStruct((n, OUT_CH, hw), jnp.float32),
        grid=(n,),
        in_specs=[
            pl.BlockSpec((1, IN_CH, hw), lambda b: (b, 0, 0)),
            bcast((MID, IN_CH)),
            bcast((MID, 1)), bcast((MID, 1)),
            bcast((MID, KSIZE * KSIZE)),
            bcast((KSIZE * KSIZE, hw)),
            bcast((MID, 1)), bcast((MID, 1)),
            bcast((MID, SQZ)), bcast((1, SQZ)),
            bcast((MID, SQZ)), bcast((MID, 1)),
            bcast((OUT_CH, MID)),
            bcast((OUT_CH, 1)), bcast((OUT_CH, 1)),
        ],
        out_specs=pl.BlockSpec((1, OUT_CH, hw), lambda b: (b, 0, 0)),
        compiler_params=pltpu.CompilerParams(dimension_semantics=("parallel",)),
    )(x3, w_exp_t, s0, b0, w_dw_t, mask, s1, b1,
      p["w_se1"], p["b_se1"], w_se2t, b_se2c, w_proj_t, s2, b2)

    return out.reshape(n, OUT_CH, h, w)                        # already NCHW


# --------------------------- pure-JAX reference -------------------------------
def mbconv_reference(x_nchw, p):
    x = jnp.transpose(x_nchw, (0, 2, 3, 1)).astype(jnp.float32)
    n = x.shape[0]
    swish = lambda t: t * jax.nn.sigmoid(t)
    # expand
    hexp = x.reshape(-1, IN_CH) @ p["w_exp"]
    hexp = swish(hexp * p["bn0_scale"] + p["bn0_bias"]).reshape(n, H, W, MID)
    # depthwise
    hp = jnp.pad(hexp, ((0, 0), (1, 1), (1, 1), (0, 0)))
    acc = jnp.zeros((n, H, W, MID), jnp.float32)
    for di in range(KSIZE):
        for dj in range(KSIZE):
            acc = acc + hp[:, di:di + H, dj:dj + W, :] * p["w_dw"][di, dj, :]
    hdw = swish(acc * p["bn1_scale"].reshape(1, 1, 1, MID)
                + p["bn1_bias"].reshape(1, 1, 1, MID))
    # SE
    pooled = hdw.mean(axis=(1, 2))                                 # (N, MID)
    s = swish(pooled @ p["w_se1"] + p["b_se1"])
    s = jax.nn.sigmoid(s @ p["w_se2"] + p["b_se2"])                # (N, MID)
    hse = hdw * s[:, None, None, :]
    # project + skip
    y = hse.reshape(-1, MID) @ p["w_proj"]
    y = (y * p["bn2_scale"] + p["bn2_bias"]).reshape(n, H, W, OUT_CH) + x
    return jnp.transpose(y, (0, 3, 1, 2))


# ------------------------------- params ---------------------------------------
def make_params(key):
    ks = jax.random.split(key, 10)

    def folded_bn(k, c):
        k1, k2, k3, k4 = jax.random.split(k, 4)
        gamma = 1.0 + 0.1 * jax.random.normal(k1, (c,))
        beta = 0.1 * jax.random.normal(k2, (c,))
        mean = 0.1 * jax.random.normal(k3, (c,))
        var = jax.random.uniform(k4, (c,), minval=0.5, maxval=1.5)
        scale = gamma / jnp.sqrt(var + BN_EPS)
        bias = beta - mean * scale
        return (scale.reshape(1, c).astype(jnp.float32),
                bias.reshape(1, c).astype(jnp.float32))

    p = {}
    p["w_exp"] = (0.3 * jax.random.normal(ks[0], (IN_CH, MID))).astype(jnp.float32)
    p["bn0_scale"], p["bn0_bias"] = folded_bn(ks[1], MID)
    p["w_dw"] = (0.3 * jax.random.normal(ks[2], (KSIZE, KSIZE, MID))).astype(jnp.float32)
    p["bn1_scale"], p["bn1_bias"] = folded_bn(ks[3], MID)
    p["w_se1"] = (0.3 * jax.random.normal(ks[4], (MID, SQZ))).astype(jnp.float32)
    p["b_se1"] = (0.1 * jax.random.normal(ks[5], (1, SQZ))).astype(jnp.float32)
    p["w_se2"] = (0.3 * jax.random.normal(ks[6], (SQZ, MID))).astype(jnp.float32)
    p["b_se2"] = (0.1 * jax.random.normal(ks[7], (1, MID))).astype(jnp.float32)
    p["w_proj"] = (0.3 * jax.random.normal(ks[8], (MID, OUT_CH))).astype(jnp.float32)
    p["bn2_scale"], p["bn2_bias"] = folded_bn(ks[9], OUT_CH)
    return p


# --------------------------------- main ----------------------------------------
if __name__ == "__main__":
    key = jax.random.PRNGKey(0)
    kx, kp = jax.random.split(key)
    x = jax.random.normal(kx, (BATCH, IN_CH, H, W), dtype=jnp.float32)   # NCHW, like PyTorch
    params = make_params(kp)

    out = jax.block_until_ready(mbconv_forward(x, params))
    ref = jax.block_until_ready(mbconv_reference(x, params))

    assert out.shape == (BATCH, OUT_CH, H, W), out.shape
    assert jnp.allclose(out, ref, rtol=1e-4, atol=1e-4), float(jnp.max(jnp.abs(out - ref)))
    print("KERNEL_OK")
</pallas_src>

<mosaic_0001>
module attributes {stable_mosaic.version = 11 : i64} {
  func.func @_mbconv_kernel(%arg0: i32, %arg1: memref<1x4x256xf32, #tpu.memory_space<vmem>>, %arg2: memref<24x4xf32, #tpu.memory_space<vmem>>, %arg3: memref<24x1xf32, #tpu.memory_space<vmem>>, %arg4: memref<24x1xf32, #tpu.memory_space<vmem>>, %arg5: memref<24x9xf32, #tpu.memory_space<vmem>>, %arg6: memref<9x256xf32, #tpu.memory_space<vmem>>, %arg7: memref<24x1xf32, #tpu.memory_space<vmem>>, %arg8: memref<24x1xf32, #tpu.memory_space<vmem>>, %arg9: memref<24x1xf32, #tpu.memory_space<vmem>>, %arg10: memref<1x1xf32, #tpu.memory_space<vmem>>, %arg11: memref<24x1xf32, #tpu.memory_space<vmem>>, %arg12: memref<24x1xf32, #tpu.memory_space<vmem>>, %arg13: memref<4x24xf32, #tpu.memory_space<vmem>>, %arg14: memref<4x1xf32, #tpu.memory_space<vmem>>, %arg15: memref<4x1xf32, #tpu.memory_space<vmem>>, %arg16: memref<1x4x256xf32, #tpu.memory_space<vmem>>) attributes {dimension_semantics = [#tpu.dimension_semantics<parallel>], iteration_bounds = array<i64: 2>, scalar_prefetch = 0 : i64, scratch_operands = 0 : i64, tpu.core_type = #tpu.core_type<tc>, window_params = [{transform_indices = @transform_0, window_bounds = array<i64: 1, 4, 256>}, {pipeline_mode = #tpu.pipeline_mode<synchronous>, transform_indices = @transform_1, window_bounds = array<i64: 24, 4>}, {pipeline_mode = #tpu.pipeline_mode<synchronous>, transform_indices = @transform_2, window_bounds = array<i64: 24, 1>}, {pipeline_mode = #tpu.pipeline_mode<synchronous>, transform_indices = @transform_3, window_bounds = array<i64: 24, 1>}, {pipeline_mode = #tpu.pipeline_mode<synchronous>, transform_indices = @transform_4, window_bounds = array<i64: 24, 9>}, {pipeline_mode = #tpu.pipeline_mode<synchronous>, transform_indices = @transform_5, window_bounds = array<i64: 9, 256>}, {pipeline_mode = #tpu.pipeline_mode<synchronous>, transform_indices = @transform_6, window_bounds = array<i64: 24, 1>}, {pipeline_mode = #tpu.pipeline_mode<synchronous>, transform_indices = @transform_7, window_bounds = array<i64: 24, 1>}, {pipeline_mode = #tpu.pipeline_mode<synchronous>, transform_indices = @transform_8, window_bounds = array<i64: 24, 1>}, {pipeline_mode = #tpu.pipeline_mode<synchronous>, transform_indices = @transform_9, window_bounds = array<i64: 1, 1>}, {pipeline_mode = #tpu.pipeline_mode<synchronous>, transform_indices = @transform_10, window_bounds = array<i64: 24, 1>}, {pipeline_mode = #tpu.pipeline_mode<synchronous>, transform_indices = @transform_11, window_bounds = array<i64: 24, 1>}, {pipeline_mode = #tpu.pipeline_mode<synchronous>, transform_indices = @transform_12, window_bounds = array<i64: 4, 24>}, {pipeline_mode = #tpu.pipeline_mode<synchronous>, transform_indices = @transform_13, window_bounds = array<i64: 4, 1>}, {pipeline_mode = #tpu.pipeline_mode<synchronous>, transform_indices = @transform_14, window_bounds = array<i64: 4, 1>}, {transform_indices = @transform_15, window_bounds = array<i64: 1, 4, 256>}]} {
    %c0 = arith.constant 0 : index
    %c0_0 = arith.constant 0 : index
    %c0_1 = arith.constant 0 : index
    %0 = vector.load %arg1[%c0, %c0_0, %c0_1] : memref<1x4x256xf32, #tpu.memory_space<vmem>>, vector<1x4x256xf32>
    %1 = vector.shape_cast %0 : vector<1x4x256xf32> to vector<4x256xf32>
    %c0_2 = arith.constant 0 : index
    %c0_3 = arith.constant 0 : index
    %2 = vector.load %arg2[%c0_2, %c0_3] : memref<24x4xf32, #tpu.memory_space<vmem>>, vector<24x4xf32>
    %3 = vector.extract_strided_slice %2 {offsets = [0, 0], sizes = [24, 1], strides = [1, 1]} : vector<24x4xf32> to vector<24x1xf32>
    %4 = vector.extract_strided_slice %1 {offsets = [0, 0], sizes = [1, 256], strides = [1, 1]} : vector<4x256xf32> to vector<1x256xf32>
    %5 = vector.broadcast %3 : vector<24x1xf32> to vector<24x256xf32>
    %6 = vector.broadcast %4 : vector<1x256xf32> to vector<24x256xf32>
    %7 = arith.mulf %5, %6 : vector<24x256xf32>
    %8 = vector.extract_strided_slice %2 {offsets = [0, 1], sizes = [24, 1], strides = [1, 1]} : vector<24x4xf32> to vector<24x1xf32>
    %9 = vector.extract_strided_slice %1 {offsets = [1, 0], sizes = [1, 256], strides = [1, 1]} : vector<4x256xf32> to vector<1x256xf32>
    %10 = vector.broadcast %8 : vector<24x1xf32> to vector<24x256xf32>
    %11 = vector.broadcast %9 : vector<1x256xf32> to vector<24x256xf32>
    %12 = arith.mulf %10, %11 : vector<24x256xf32>
    %13 = arith.addf %7, %12 : vector<24x256xf32>
    %14 = vector.extract_strided_slice %2 {offsets = [0, 2], sizes = [24, 1], strides = [1, 1]} : vector<24x4xf32> to vector<24x1xf32>
    %15 = vector.extract_strided_slice %1 {offsets = [2, 0], sizes = [1, 256], strides = [1, 1]} : vector<4x256xf32> to vector<1x256xf32>
    %16 = vector.broadcast %14 : vector<24x1xf32> to vector<24x256xf32>
    %17 = vector.broadcast %15 : vector<1x256xf32> to vector<24x256xf32>
    %18 = arith.mulf %16, %17 : vector<24x256xf32>
    %19 = arith.addf %13, %18 : vector<24x256xf32>
    %20 = vector.extract_strided_slice %2 {offsets = [0, 3], sizes = [24, 1], strides = [1, 1]} : vector<24x4xf32> to vector<24x1xf32>
    %21 = vector.extract_strided_slice %1 {offsets = [3, 0], sizes = [1, 256], strides = [1, 1]} : vector<4x256xf32> to vector<1x256xf32>
    %22 = vector.broadcast %20 : vector<24x1xf32> to vector<24x256xf32>
    %23 = vector.broadcast %21 : vector<1x256xf32> to vector<24x256xf32>
    %24 = arith.mulf %22, %23 : vector<24x256xf32>
    %25 = arith.addf %19, %24 : vector<24x256xf32>
    %c0_4 = arith.constant 0 : index
    %c0_5 = arith.constant 0 : index
    %26 = vector.load %arg3[%c0_4, %c0_5] : memref<24x1xf32, #tpu.memory_space<vmem>>, vector<24x1xf32>
    %27 = vector.broadcast %26 : vector<24x1xf32> to vector<24x256xf32>
    %28 = arith.mulf %25, %27 : vector<24x256xf32>
    %c0_6 = arith.constant 0 : index
    %c0_7 = arith.constant 0 : index
    %29 = vector.load %arg4[%c0_6, %c0_7] : memref<24x1xf32, #tpu.memory_space<vmem>>, vector<24x1xf32>
    %30 = vector.broadcast %29 : vector<24x1xf32> to vector<24x256xf32>
    %31 = arith.addf %28, %30 : vector<24x256xf32>
    %32 = arith.negf %31 : vector<24x256xf32>
    %33 = math.exp %32 : vector<24x256xf32>
    %cst = arith.constant 1.000000e+00 : f32
    %34 = vector.broadcast %cst : f32 to vector<24x256xf32>
    %35 = arith.addf %34, %33 : vector<24x256xf32>
    %36 = arith.divf %34, %35 : vector<24x256xf32>
    %37 = arith.mulf %31, %36 : vector<24x256xf32>
    %c0_8 = arith.constant 0 : index
    %c0_9 = arith.constant 0 : index
    %38 = vector.load %arg5[%c0_8, %c0_9] : memref<24x9xf32, #tpu.memory_space<vmem>>, vector<24x9xf32>
    %c0_10 = arith.constant 0 : index
    %c0_11 = arith.constant 0 : index
    %39 = vector.load %arg6[%c0_10, %c0_11] : memref<9x256xf32, #tpu.memory_space<vmem>>, vector<9x256xf32>
    %cst_12 = arith.constant 0.000000e+00 : f32
    %40 = vector.broadcast %cst_12 : f32 to vector<24x256xf32>
    %41 = vector.extract_strided_slice %37 {offsets = [0, 239], sizes = [24, 17], strides = [1, 1]} : vector<24x256xf32> to vector<24x17xf32>
    %42 = vector.extract_strided_slice %37 {offsets = [0, 0], sizes = [24, 239], strides = [1, 1]} : vector<24x256xf32> to vector<24x239xf32>
    %43 = tpu.concatenate %41, %42 in 1 : vector<24x17xf32>, vector<24x239xf32> -> vector<24x256xf32>
    %44 = vector.extract_strided_slice %39 {offsets = [0, 0], sizes = [1, 256], strides = [1, 1]} : vector<9x256xf32> to vector<1x256xf32>
    %45 = vector.broadcast %44 : vector<1x256xf32> to vector<24x256xf32>
    %46 = arith.mulf %43, %45 : vector<24x256xf32>
    %47 = vector.extract_strided_slice %38 {offsets = [0, 0], sizes = [24, 1], strides = [1, 1]} : vector<24x9xf32> to vector<24x1xf32>
    %48 = vector.broadcast %47 : vector<24x1xf32> to vector<24x256xf32>
    %49 = arith.mulf %46, %48 : vector<24x256xf32>
    %50 = arith.addf %40, %49 : vector<24x256xf32>
    %51 = vector.extract_strided_slice %37 {offsets = [0, 240], sizes = [24, 16], strides = [1, 1]} : vector<24x256xf32> to vector<24x16xf32>
    %52 = vector.extract_strided_slice %37 {offsets = [0, 0], sizes = [24, 240], strides = [1, 1]} : vector<24x256xf32> to vector<24x240xf32>
    %53 = tpu.concatenate %51, %52 in 1 : vector<24x16xf32>, vector<24x240xf32> -> vector<24x256xf32>
    %54 = vector.extract_strided_slice %39 {offsets = [1, 0], sizes = [1, 256], strides = [1, 1]} : vector<9x256xf32> to vector<1x256xf32>
    %55 = vector.broadcast %54 : vector<1x256xf32> to vector<24x256xf32>
    %56 = arith.mulf %53, %55 : vector<24x256xf32>
    %57 = vector.extract_strided_slice %38 {offsets = [0, 1], sizes = [24, 1], strides = [1, 1]} : vector<24x9xf32> to vector<24x1xf32>
    %58 = vector.broadcast %57 : vector<24x1xf32> to vector<24x256xf32>
    %59 = arith.mulf %56, %58 : vector<24x256xf32>
    %60 = arith.addf %50, %59 : vector<24x256xf32>
    %61 = vector.extract_strided_slice %37 {offsets = [0, 241], sizes = [24, 15], strides = [1, 1]} : vector<24x256xf32> to vector<24x15xf32>
    %62 = vector.extract_strided_slice %37 {offsets = [0, 0], sizes = [24, 241], strides = [1, 1]} : vector<24x256xf32> to vector<24x241xf32>
    %63 = tpu.concatenate %61, %62 in 1 : vector<24x15xf32>, vector<24x241xf32> -> vector<24x256xf32>
    %64 = vector.extract_strided_slice %39 {offsets = [2, 0], sizes = [1, 256], strides = [1, 1]} : vector<9x256xf32> to vector<1x256xf32>
    %65 = vector.broadcast %64 : vector<1x256xf32> to vector<24x256xf32>
    %66 = arith.mulf %63, %65 : vector<24x256xf32>
    %67 = vector.extract_strided_slice %38 {offsets = [0, 2], sizes = [24, 1], strides = [1, 1]} : vector<24x9xf32> to vector<24x1xf32>
    %68 = vector.broadcast %67 : vector<24x1xf32> to vector<24x256xf32>
    %69 = arith.mulf %66, %68 : vector<24x256xf32>
    %70 = arith.addf %60, %69 : vector<24x256xf32>
    %71 = vector.extract_strided_slice %37 {offsets = [0, 255], sizes = [24, 1], strides = [1, 1]} : vector<24x256xf32> to vector<24x1xf32>
    %72 = vector.extract_strided_slice %37 {offsets = [0, 0], sizes = [24, 255], strides = [1, 1]} : vector<24x256xf32> to vector<24x255xf32>
    %73 = tpu.concatenate %71, %72 in 1 : vector<24x1xf32>, vector<24x255xf32> -> vector<24x256xf32>
    %74 = vector.extract_strided_slice %39 {offsets = [3, 0], sizes = [1, 256], strides = [1, 1]} : vector<9x256xf32> to vector<1x256xf32>
    %75 = vector.broadcast %74 : vector<1x256xf32> to vector<24x256xf32>
    %76 = arith.mulf %73, %75 : vector<24x256xf32>
    %77 = vector.extract_strided_slice %38 {offsets = [0, 3], sizes = [24, 1], strides = [1, 1]} : vector<24x9xf32> to vector<24x1xf32>
    %78 = vector.broadcast %77 : vector<24x1xf32> to vector<24x256xf32>
    %79 = arith.mulf %76, %78 : vector<24x256xf32>
    %80 = arith.addf %70, %79 : vector<24x256xf32>
    %81 = vector.extract_strided_slice %39 {offsets = [4, 0], sizes = [1, 256], strides = [1, 1]} : vector<9x256xf32> to vector<1x256xf32>
    %82 = vector.broadcast %81 : vector<1x256xf32> to vector<24x256xf32>
    %83 = arith.mulf %37, %82 : vector<24x256xf32>
    %84 = vector.extract_strided_slice %38 {offsets = [0, 4], sizes = [24, 1], strides = [1, 1]} : vector<24x9xf32> to vector<24x1xf32>
    %85 = vector.broadcast %84 : vector<24x1xf32> to vector<24x256xf32>
    %86 = arith.mulf %83, %85 : vector<24x256xf32>
    %87 = arith.addf %80, %86 : vector<24x256xf32>
    %88 = vector.extract_strided_slice %37 {offsets = [0, 1], sizes = [24, 255], strides = [1, 1]} : vector<24x256xf32> to vector<24x255xf32>
    %89 = vector.extract_strided_slice %37 {offsets = [0, 0], sizes = [24, 1], strides = [1, 1]} : vector<24x256xf32> to vector<24x1xf32>
    %90 = tpu.concatenate %88, %89 in 1 : vector<24x255xf32>, vector<24x1xf32> -> vector<24x256xf32>
    %91 = vector.extract_strided_slice %39 {offsets = [5, 0], sizes = [1, 256], strides = [1, 1]} : vector<9x256xf32> to vector<1x256xf32>
    %92 = vector.broadcast %91 : vector<1x256xf32> to vector<24x256xf32>
    %93 = arith.mulf %90, %92 : vector<24x256xf32>
    %94 = vector.extract_strided_slice %38 {offsets = [0, 5], sizes = [24, 1], strides = [1, 1]} : vector<24x9xf32> to vector<24x1xf32>
    %95 = vector.broadcast %94 : vector<24x1xf32> to vector<24x256xf32>
    %96 = arith.mulf %93, %95 : vector<24x256xf32>
    %97 = arith.addf %87, %96 : vector<24x256xf32>
    %98 = vector.extract_strided_slice %37 {offsets = [0, 15], sizes = [24, 241], strides = [1, 1]} : vector<24x256xf32> to vector<24x241xf32>
    %99 = vector.extract_strided_slice %37 {offsets = [0, 0], sizes = [24, 15], strides = [1, 1]} : vector<24x256xf32> to vector<24x15xf32>
    %100 = tpu.concatenate %98, %99 in 1 : vector<24x241xf32>, vector<24x15xf32> -> vector<24x256xf32>
    %101 = vector.extract_strided_slice %39 {offsets = [6, 0], sizes = [1, 256], strides = [1, 1]} : vector<9x256xf32> to vector<1x256xf32>
    %102 = vector.broadcast %101 : vector<1x256xf32> to vector<24x256xf32>
    %103 = arith.mulf %100, %102 : vector<24x256xf32>
    %104 = vector.extract_strided_slice %38 {offsets = [0, 6], sizes = [24, 1], strides = [1, 1]} : vector<24x9xf32> to vector<24x1xf32>
    %105 = vector.broadcast %104 : vector<24x1xf32> to vector<24x256xf32>
    %106 = arith.mulf %103, %105 : vector<24x256xf32>
    %107 = arith.addf %97, %106 : vector<24x256xf32>
    %108 = vector.extract_strided_slice %37 {offsets = [0, 16], sizes = [24, 240], strides = [1, 1]} : vector<24x256xf32> to vector<24x240xf32>
    %109 = vector.extract_strided_slice %37 {offsets = [0, 0], sizes = [24, 16], strides = [1, 1]} : vector<24x256xf32> to vector<24x16xf32>
    %110 = tpu.concatenate %108, %109 in 1 : vector<24x240xf32>, vector<24x16xf32> -> vector<24x256xf32>
    %111 = vector.extract_strided_slice %39 {offsets = [7, 0], sizes = [1, 256], strides = [1, 1]} : vector<9x256xf32> to vector<1x256xf32>
    %112 = vector.broadcast %111 : vector<1x256xf32> to vector<24x256xf32>
    %113 = arith.mulf %110, %112 : vector<24x256xf32>
    %114 = vector.extract_strided_slice %38 {offsets = [0, 7], sizes = [24, 1], strides = [1, 1]} : vector<24x9xf32> to vector<24x1xf32>
    %115 = vector.broadcast %114 : vector<24x1xf32> to vector<24x256xf32>
    %116 = arith.mulf %113, %115 : vector<24x256xf32>
    %117 = arith.addf %107, %116 : vector<24x256xf32>
    %118 = vector.extract_strided_slice %37 {offsets = [0, 17], sizes = [24, 239], strides = [1, 1]} : vector<24x256xf32> to vector<24x239xf32>
    %119 = vector.extract_strided_slice %37 {offsets = [0, 0], sizes = [24, 17], strides = [1, 1]} : vector<24x256xf32> to vector<24x17xf32>
    %120 = tpu.concatenate %118, %119 in 1 : vector<24x239xf32>, vector<24x17xf32> -> vector<24x256xf32>
    %121 = vector.extract_strided_slice %39 {offsets = [8, 0], sizes = [1, 256], strides = [1, 1]} : vector<9x256xf32> to vector<1x256xf32>
    %122 = vector.broadcast %121 : vector<1x256xf32> to vector<24x256xf32>
    %123 = arith.mulf %120, %122 : vector<24x256xf32>
    %124 = vector.extract_strided_slice %38 {offsets = [0, 8], sizes = [24, 1], strides = [1, 1]} : vector<24x9xf32> to vector<24x1xf32>
    %125 = vector.broadcast %124 : vector<24x1xf32> to vector<24x256xf32>
    %126 = arith.mulf %123, %125 : vector<24x256xf32>
    %127 = arith.addf %117, %126 : vector<24x256xf32>
    %c0_13 = arith.constant 0 : index
    %c0_14 = arith.constant 0 : index
    %128 = vector.load %arg7[%c0_13, %c0_14] : memref<24x1xf32, #tpu.memory_space<vmem>>, vector<24x1xf32>
    %129 = vector.broadcast %128 : vector<24x1xf32> to vector<24x256xf32>
    %130 = arith.mulf %127, %129 : vector<24x256xf32>
    %c0_15 = arith.constant 0 : index
    %c0_16 = arith.constant 0 : index
    %131 = vector.load %arg8[%c0_15, %c0_16] : memref<24x1xf32, #tpu.memory_space<vmem>>, vector<24x1xf32>
    %132 = vector.broadcast %131 : vector<24x1xf32> to vector<24x256xf32>
    %133 = arith.addf %130, %132 : vector<24x256xf32>
    %134 = arith.negf %133 : vector<24x256xf32>
    %135 = math.exp %134 : vector<24x256xf32>
    %cst_17 = arith.constant 1.000000e+00 : f32
    %136 = vector.broadcast %cst_17 : f32 to vector<24x256xf32>
    %137 = arith.addf %136, %135 : vector<24x256xf32>
    %138 = arith.divf %136, %137 : vector<24x256xf32>
    %139 = arith.mulf %133, %138 : vector<24x256xf32>
    %cst_18 = arith.constant dense<0.000000e+00> : vector<24xf32>
    %140 = vector.multi_reduction <add>, %139, %cst_18 [1] : vector<24x256xf32> to vector<24xf32>
    %141 = vector.shape_cast %140 : vector<24xf32> to vector<24x1xf32>
    %cst_19 = arith.constant 3.906250e-03 : f32
    %142 = vector.broadcast %cst_19 : f32 to vector<24x1xf32>
    %143 = arith.mulf %141, %142 : vector<24x1xf32>
    %c0_20 = arith.constant 0 : index
    %c0_21 = arith.constant 0 : index
    %144 = vector.load %arg9[%c0_20, %c0_21] : memref<24x1xf32, #tpu.memory_space<vmem>>, vector<24x1xf32>
    %145 = arith.mulf %144, %143 : vector<24x1xf32>
    %cst_22 = arith.constant dense<0.000000e+00> : vector<1xf32>
    %146 = vector.multi_reduction <add>, %145, %cst_22 [0] : vector<24x1xf32> to vector<1xf32>
    %147 = vector.shape_cast %146 : vector<1xf32> to vector<1x1xf32>
    %c0_23 = arith.constant 0 : index
    %c0_24 = arith.constant 0 : index
    %148 = vector.load %arg10[%c0_23, %c0_24] : memref<1x1xf32, #tpu.memory_space<vmem>>, vector<1x1xf32>
    %149 = arith.addf %147, %148 : vector<1x1xf32>
    %150 = arith.negf %149 : vector<1x1xf32>
    %151 = math.exp %150 : vector<1x1xf32>
    %cst_25 = arith.constant 1.000000e+00 : f32
    %152 = vector.broadcast %cst_25 : f32 to vector<1x1xf32>
    %153 = arith.addf %152, %151 : vector<1x1xf32>
    %154 = arith.divf %152, %153 : vector<1x1xf32>
    %155 = arith.mulf %149, %154 : vector<1x1xf32>
    %c0_26 = arith.constant 0 : index
    %c0_27 = arith.constant 0 : index
    %156 = vector.load %arg11[%c0_26, %c0_27] : memref<24x1xf32, #tpu.memory_space<vmem>>, vector<24x1xf32>
    %157 = vector.broadcast %155 : vector<1x1xf32> to vector<24x1xf32>
    %158 = arith.mulf %156, %157 : vector<24x1xf32>
    %cst_28 = arith.constant dense<0.000000e+00> : vector<24xf32>
    %159 = vector.multi_reduction <add>, %158, %cst_28 [1] : vector<24x1xf32> to vector<24xf32>
    %160 = vector.shape_cast %159 : vector<24xf32> to vector<24x1xf32>
    %c0_29 = arith.constant 0 : index
    %c0_30 = arith.constant 0 : index
    %161 = vector.load %arg12[%c0_29, %c0_30] : memref<24x1xf32, #tpu.memory_space<vmem>>, vector<24x1xf32>
    %162 = arith.addf %160, %161 : vector<24x1xf32>
    %163 = arith.negf %162 : vector<24x1xf32>
    %164 = math.exp %163 : vector<24x1xf32>
    %cst_31 = arith.constant 1.000000e+00 : f32
    %165 = vector.broadcast %cst_31 : f32 to vector<24x1xf32>
    %166 = arith.addf %165, %164 : vector<24x1xf32>
    %167 = arith.divf %165, %166 : vector<24x1xf32>
    %c0_32 = arith.constant 0 : index
    %c0_33 = arith.constant 0 : index
    %168 = vector.load %arg13[%c0_32, %c0_33] : memref<4x24xf32, #tpu.memory_space<vmem>>, vector<4x24xf32>
    %169 = vector.broadcast %167 : vector<24x1xf32> to vector<24x256xf32>
    %170 = arith.mulf %139, %169 : vector<24x256xf32>
    %cst_34 = arith.constant dense<0.000000e+00> : vector<4x256xf32>
    %171 = tpu.matmul %168, %170, %cst_34 {dimension_numbers = #tpu.dot_dimension_numbers<[1], [0], [0], [1], [0, 0, 1, 1], [], []>} : vector<4x24xf32>, vector<24x256xf32>, vector<4x256xf32> -> vector<4x256xf32>
    %c0_35 = arith.constant 0 : index
    %c0_36 = arith.constant 0 : index
    %172 = vector.load %arg14[%c0_35, %c0_36] : memref<4x1xf32, #tpu.memory_space<vmem>>, vector<4x1xf32>
    %173 = vector.broadcast %172 : vector<4x1xf32> to vector<4x256xf32>
    %174 = arith.mulf %171, %173 : vector<4x256xf32>
    %c0_37 = arith.constant 0 : index
    %c0_38 = arith.constant 0 : index
    %175 = vector.load %arg15[%c0_37, %c0_38] : memref<4x1xf32, #tpu.memory_space<vmem>>, vector<4x1xf32>
    %176 = vector.broadcast %175 : vector<4x1xf32> to vector<4x256xf32>
    %177 = arith.addf %174, %176 : vector<4x256xf32>
    %178 = arith.addf %177, %1 : vector<4x256xf32>
    %c0_39 = arith.constant 0 : index
    %c0_40 = arith.constant 0 : index
    %c0_41 = arith.constant 0 : index
    %179 = vector.load %arg16[%c0_39, %c0_40, %c0_41] : memref<1x4x256xf32, #tpu.memory_space<vmem>>, vector<1x4x256xf32>
    %180 = vector.shape_cast %179 : vector<1x4x256xf32> to vector<4x256xf32>
    %181 = vector.shape_cast %178 : vector<4x256xf32> to vector<1x4x256xf32>
    tpu.vector_store %arg16[%c0_39, %c0_40, %c0_41], %181 {strides = array<i32>} : memref<1x4x256xf32, #tpu.memory_space<vmem>>, vector<1x4x256xf32>,
    return
  }
  func.func @transform_0(%arg0: i32) -> (i32, i32, i32) {
    %c0_i32 = arith.constant 0 : i32
    %c0_i32_0 = arith.constant 0 : i32
    %c0_i32_1 = arith.constant 0 : i32
    return %arg0, %c0_i32, %c0_i32_0 : i32, i32, i32
  }
  func.func @transform_1(%arg0: i32) -> (i32, i32) {
    %c0_i32 = arith.constant 0 : i32
    %c0_i32_0 = arith.constant 0 : i32
    %c0_i32_1 = arith.constant 0 : i32
    return %c0_i32, %c0_i32_0 : i32, i32
  }
  func.func @transform_2(%arg0: i32) -> (i32, i32) {
    %c0_i32 = arith.constant 0 : i32
    %c0_i32_0 = arith.constant 0 : i32
    %c0_i32_1 = arith.constant 0 : i32
    return %c0_i32, %c0_i32_0 : i32, i32
  }
  func.func @transform_3(%arg0: i32) -> (i32, i32) {
    %c0_i32 = arith.constant 0 : i32
    %c0_i32_0 = arith.constant 0 : i32
    %c0_i32_1 = arith.constant 0 : i32
    return %c0_i32, %c0_i32_0 : i32, i32
  }
  func.func @transform_4(%arg0: i32) -> (i32, i32) {
    %c0_i32 = arith.constant 0 : i32
    %c0_i32_0 = arith.constant 0 : i32
    %c0_i32_1 = arith.constant 0 : i32
    return %c0_i32, %c0_i32_0 : i32, i32
  }
  func.func @transform_5(%arg0: i32) -> (i32, i32) {
    %c0_i32 = arith.constant 0 : i32
    %c0_i32_0 = arith.constant 0 : i32
    %c0_i32_1 = arith.constant 0 : i32
    return %c0_i32, %c0_i32_0 : i32, i32
  }
  func.func @transform_6(%arg0: i32) -> (i32, i32) {
    %c0_i32 = arith.constant 0 : i32
    %c0_i32_0 = arith.constant 0 : i32
    %c0_i32_1 = arith.constant 0 : i32
    return %c0_i32, %c0_i32_0 : i32, i32
  }
  func.func @transform_7(%arg0: i32) -> (i32, i32) {
    %c0_i32 = arith.constant 0 : i32
    %c0_i32_0 = arith.constant 0 : i32
    %c0_i32_1 = arith.constant 0 : i32
    return %c0_i32, %c0_i32_0 : i32, i32
  }
  func.func @transform_8(%arg0: i32) -> (i32, i32) {
    %c0_i32 = arith.constant 0 : i32
    %c0_i32_0 = arith.constant 0 : i32
    %c0_i32_1 = arith.constant 0 : i32
    return %c0_i32, %c0_i32_0 : i32, i32
  }
  func.func @transform_9(%arg0: i32) -> (i32, i32) {
    %c0_i32 = arith.constant 0 : i32
    %c0_i32_0 = arith.constant 0 : i32
    %c0_i32_1 = arith.constant 0 : i32
    return %c0_i32, %c0_i32_0 : i32, i32
  }
  func.func @transform_10(%arg0: i32) -> (i32, i32) {
    %c0_i32 = arith.constant 0 : i32
    %c0_i32_0 = arith.constant 0 : i32
    %c0_i32_1 = arith.constant 0 : i32
    return %c0_i32, %c0_i32_0 : i32, i32
  }
  func.func @transform_11(%arg0: i32) -> (i32, i32) {
    %c0_i32 = arith.constant 0 : i32
    %c0_i32_0 = arith.constant 0 : i32
    %c0_i32_1 = arith.constant 0 : i32
    return %c0_i32, %c0_i32_0 : i32, i32
  }
  func.func @transform_12(%arg0: i32) -> (i32, i32) {
    %c0_i32 = arith.constant 0 : i32
    %c0_i32_0 = arith.constant 0 : i32
    %c0_i32_1 = arith.constant 0 : i32
    return %c0_i32, %c0_i32_0 : i32, i32
  }
  func.func @transform_13(%arg0: i32) -> (i32, i32) {
    %c0_i32 = arith.constant 0 : i32
    %c0_i32_0 = arith.constant 0 : i32
    %c0_i32_1 = arith.constant 0 : i32
    return %c0_i32, %c0_i32_0 : i32, i32
  }
  func.func @transform_14(%arg0: i32) -> (i32, i32) {
    %c0_i32 = arith.constant 0 : i32
    %c0_i32_0 = arith.constant 0 : i32
    %c0_i32_1 = arith.constant 0 : i32
    return %c0_i32, %c0_i32_0 : i32, i32
  }
  func.func @transform_15(%arg0: i32) -> (i32, i32, i32) {
    %c0_i32 = arith.constant 0 : i32
    %c0_i32_0 = arith.constant 0 : i32
    %c0_i32_1 = arith.constant 0 : i32
    return %arg0, %c0_i32, %c0_i32_0 : i32, i32, i32
  }
}

</mosaic_0001>

<llo_original>
// kernel: tpu_custom_call.1
$region0: #{tpu_custom_call.1}
  #allocation0 [shape = 'u32[]', space=smem, size = 0x4, offset = 0x4, fixed_abs, tag = 'smem constant byte address 0x4 - core index']
  #allocation1 [shape = 'u32[144,128]{1,0:T(1,128)}', space=vmem, size = 0x12000, scoped, tag = 'internal scratch']
  #allocation2 [shape = 'f32[1,1]{1,0:T(1,128)S(1)}', space=vmem, size = 0x200, scoped, tag = 'scoped memory for tpu_custom_call.1']
  %s0 = inlined_call_operand.vmem [shape: f32[2,4,256], index: 0, kind: input, shape index: {}]
  %s1 = inlined_call_operand.vmem [shape: f32[24,4], index: 1, kind: input, shape index: {}]
  %s2 = inlined_call_operand.vmem [shape: f32[24,1], index: 2, kind: input, shape index: {}]
  %s3 = inlined_call_operand.vmem [shape: f32[24,1], index: 3, kind: input, shape index: {}]
  %s4 = inlined_call_operand.vmem [shape: f32[24,9], index: 4, kind: input, shape index: {}]
  %s5 = inlined_call_operand.vmem [shape: f32[9,256], index: 5, kind: input, shape index: {}]
  %s6 = inlined_call_operand.vmem [shape: f32[24,1], index: 6, kind: input, shape index: {}]
  %s7 = inlined_call_operand.vmem [shape: f32[24,1], index: 7, kind: input, shape index: {}]
  %s8 = inlined_call_operand.vmem [shape: f32[24,1], index: 8, kind: input, shape index: {}]
  %s9 = inlined_call_operand.<no memory space> [shape: f32[1,1], index: 9, kind: input, shape index: {}]
  %s10 = inlined_call_operand.vmem [shape: f32[24,1], index: 10, kind: input, shape index: {}]
  %s11 = inlined_call_operand.vmem [shape: f32[24,1], index: 11, kind: input, shape index: {}]
  %s12 = inlined_call_operand.vmem [shape: f32[4,24], index: 12, kind: input, shape index: {}]
  %s13 = inlined_call_operand.vmem [shape: f32[4,1], index: 13, kind: input, shape index: {}]
  %s14 = inlined_call_operand.vmem [shape: f32[4,1], index: 14, kind: input, shape index: {}]
  %s15 = inlined_call_operand.hbm [shape: f32[2,4,256], index: 15, kind: output, shape index: {}]
  %s16 = sld [smem:[#allocation0]]
  $region93: #{tpu_custom_call.1} parent=0
    _
  %s18 = ssub.s32 1, %s16
  %s19 = scalar_select 0, %s18, %s16
  %v20 = vstv %s9
  %21 = vst [vmem:[#allocation2] sm:$0x1] %v20
  $region1: #{tpu_custom_call.1} parent=0
    #allocation3 [shape = 'u8[8192]{0}', space=vmem, size = 0x2000, scoped, tag = 'output window, operand 0']
    #allocation4 [shape = 's32[2]{0}', space=sflag, size = 0x8, scoped, tag = 'scoped memory for tpu_custom_call.1']
    %22 = vsyncpa [#allocation4], 0
    %s23 = scalar_lea.sflag [#allocation4], 1
    %24 = vsyncpa %s23, 0
    loop: start=0, step=1, limit=4
    $region2: #{tpu_custom_call.1} parent=1 // loop_pre_header
      _
    $region3: #{tpu_custom_call.1} parent=1 // loop_header
      %s26 = sphi 0, %s30
      %p27 = scmp.ge.s32.totalorder %s26, 4
      %s36 = sphi 0, %s38
      %s39 = sphi 0, %s36
      %s40 = sphi 0, %s39
      %s56 = sphi 0, %s40
      %s60 = sphi 0, %s60
      %s62 = sphi 0, %s60
      %s63 = sphi 0, %s62
      %s77 = sphi 0, %s63
      %s81 = sphi 0, %s81
      %s83 = sphi 0, %s81
      %s84 = sphi 0, %s83
      %s98 = sphi 0, %s84
      %s102 = sphi 0, %s102
      %s104 = sphi 0, %s102
      %s105 = sphi 0, %s104
      %s119 = sphi 0, %s105
      %s123 = sphi 0, %s123
      %s125 = sphi 0, %s123
      %s126 = sphi 0, %s125
      %s140 = sphi 0, %s126
      %s144 = sphi 0, %s144
      %s146 = sphi 0, %s144
      %s147 = sphi 0, %s146
      %s161 = sphi 0, %s147
      %s165 = sphi 0, %s165
      %s167 = sphi 0, %s165
      %s168 = sphi 0, %s167
      %s182 = sphi 0, %s168
      %s186 = sphi 0, %s186
      %s188 = sphi 0, %s186
      %s189 = sphi 0, %s188
      %s203 = sphi 0, %s189
      %s207 = sphi 0, %s207
      %s209 = sphi 0, %s207
      %s210 = sphi 0, %s209
      %s224 = sphi 0, %s210
      %s228 = sphi 0, %s228
      %s230 = sphi 0, %s228
      %s231 = sphi 0, %s230
      %s245 = sphi 0, %s231
      %s249 = sphi 0, %s249
      %s251 = sphi 0, %s249
      %s252 = sphi 0, %s251
      %s266 = sphi 0, %s252
      %s270 = sphi 0, %s270
      %s272 = sphi 0, %s270
      %s273 = sphi 0, %s272
      %s287 = sphi 0, %s273
      %s291 = sphi 0, %s291
      %s293 = sphi 0, %s291
      %s294 = sphi 0, %s293
      %s308 = sphi 0, %s294
      %s312 = sphi 0, %s312
      %s314 = sphi 0, %s312
      %s315 = sphi 0, %s314
      %s329 = sphi 0, %s315
      %s333 = sphi 0, %s333
      %s335 = sphi 0, %s333
      %s336 = sphi 0, %s335
      %s350 = sphi 0, %s336
      %s356 = sphi 0, %s358
      %s359 = sphi 0, %s356
      %s360 = sphi 0, %s359
      %s376 = sphi 0, %s360
    $region4: #{tpu_custom_call.1} parent=1 // loop_header_branch
      %29 = sbr.rel (%p27) target = $region8
    $region5: #{tpu_custom_call.1} parent=1 // loop_body
      %s31 = ssub.s32 %s26, 1
      %s32 = ssub.s32 %s26, 2
      %s33 = sadd.s32 %s26, 1
      %s34 = ssub.s32 %s26, %s33
      %p35 = scmp.eq.s32.totalorder %s34, 0
      %s37 = sadd.s32 %s36, 1
      %s38 = scalar_select %p35, %s36, %s37
      %p41 = pneg %p35
      %p42 = scmp.eq.s32.totalorder %s26, 1
      %p43 = por %p41, %p42
      %p44 = scmp.ne.s32.totalorder %s36, %s39
      %p45 = scmp.eq.s32.totalorder %s26, 0
      %p46 = por %p44, %p45
      %p47 = scmp.ne.s32.totalorder %s36, %s39
      %p48 = scmp.eq.s32.totalorder %s31, 1
      %p49 = por %p47, %p48
      %p50 = scmp.ne.s32.totalorder %s39, %s40
      %p51 = scmp.eq.s32.totalorder %s31, 0
      %p52 = por %p50, %p51
      %p53 = scmp.ne.s32.totalorder %s39, %s40
      %p54 = scmp.eq.s32.totalorder %s32, 1
      %p55 = por %p53, %p54
      %p57 = scmp.ne.s32.totalorder %s40, %s56
      %p58 = scmp.eq.s32.totalorder %s32, 0
      %p59 = por %p57, %p58
      %s61 = sadd.s32 %s60, 1
      %p64 = scmp.eq.s32.totalorder %s26, 1
      %p65 = scmp.ne.s32.totalorder %s60, %s62
      %p66 = scmp.eq.s32.totalorder %s26, 0
      %p67 = por %p65, %p66
      %p68 = scmp.ne.s32.totalorder %s60, %s62
      %p69 = scmp.eq.s32.totalorder %s31, 1
      %p70 = por %p68, %p69
      %p71 = scmp.ne.s32.totalorder %s62, %s63
      %p72 = scmp.eq.s32.totalorder %s31, 0
      %p73 = por %p71, %p72
      %p74 = scmp.ne.s32.totalorder %s62, %s63
      %p75 = scmp.eq.s32.totalorder %s32, 1
      %p76 = por %p74, %p75
      %p78 = scmp.ne.s32.totalorder %s63, %s77
      %p79 = scmp.eq.s32.totalorder %s32, 0
      %p80 = por %p78, %p79
      %s82 = sadd.s32 %s81, 1
      %p85 = scmp.eq.s32.totalorder %s26, 1
      %p86 = scmp.ne.s32.totalorder %s81, %s83
      %p87 = scmp.eq.s32.totalorder %s26, 0
      %p88 = por %p86, %p87
      %p89 = scmp.ne.s32.totalorder %s81, %s83
      %p90 = scmp.eq.s32.totalorder %s31, 1
      %p91 = por %p89, %p90
      %p92 = scmp.ne.s32.totalorder %s83, %s84
      %p93 = scmp.eq.s32.totalorder %s31, 0
      %p94 = por %p92, %p93
      %p95 = scmp.ne.s32.totalorder %s83, %s84
      %p96 = scmp.eq.s32.totalorder %s32, 1
      %p97 = por %p95, %p96
      %p99 = scmp.ne.s32.totalorder %s84, %s98
      %p100 = scmp.eq.s32.totalorder %s32, 0
      %p101 = por %p99, %p100
      %s103 = sadd.s32 %s102, 1
      %p106 = scmp.eq.s32.totalorder %s26, 1
      %p107 = scmp.ne.s32.totalorder %s102, %s104
      %p108 = scmp.eq.s32.totalorder %s26, 0
      %p109 = por %p107, %p108
      %p110 = scmp.ne.s32.totalorder %s102, %s104
      %p111 = scmp.eq.s32.totalorder %s31, 1
      %p112 = por %p110, %p111
      %p113 = scmp.ne.s32.totalorder %s104, %s105
      %p114 = scmp.eq.s32.totalorder %s31, 0
      %p115 = por %p113, %p114
      %p116 = scmp.ne.s32.totalorder %s104, %s105
      %p117 = scmp.eq.s32.totalorder %s32, 1
      %p118 = por %p116, %p117
      %p120 = scmp.ne.s32.totalorder %s105, %s119
      %p121 = scmp.eq.s32.totalorder %s32, 0
      %p122 = por %p120, %p121
      %s124 = sadd.s32 %s123, 1
      %p127 = scmp.eq.s32.totalorder %s26, 1
      %p128 = scmp.ne.s32.totalorder %s123, %s125
      %p129 = scmp.eq.s32.totalorder %s26, 0
      %p130 = por %p128, %p129
      %p131 = scmp.ne.s32.totalorder %s123, %s125
      %p132 = scmp.eq.s32.totalorder %s31, 1
      %p133 = por %p131, %p132
      %p134 = scmp.ne.s32.totalorder %s125, %s126
      %p135 = scmp.eq.s32.totalorder %s31, 0
      %p136 = por %p134, %p135
      %p137 = scmp.ne.s32.totalorder %s125, %s126
      %p138 = scmp.eq.s32.totalorder %s32, 1
      %p139 = por %p137, %p138
      %p141 = scmp.ne.s32.totalorder %s126, %s140
      %p142 = scmp.eq.s32.totalorder %s32, 0
      %p143 = por %p141, %p142
      %s145 = sadd.s32 %s144, 1
      %p148 = scmp.eq.s32.totalorder %s26, 1
      %p149 = scmp.ne.s32.totalorder %s144, %s146
      %p150 = scmp.eq.s32.totalorder %s26, 0
      %p151 = por %p149, %p150
      %p152 = scmp.ne.s32.totalorder %s144, %s146
      %p153 = scmp.eq.s32.totalorder %s31, 1
      %p154 = por %p152, %p153
      %p155 = scmp.ne.s32.totalorder %s146, %s147
      %p156 = scmp.eq.s32.totalorder %s31, 0
      %p157 = por %p155, %p156
      %p158 = scmp.ne.s32.totalorder %s146, %s147
      %p159 = scmp.eq.s32.totalorder %s32, 1
      %p160 = por %p158, %p159
      %p162 = scmp.ne.s32.totalorder %s147, %s161
      %p163 = scmp.eq.s32.totalorder %s32, 0
      %p164 = por %p162, %p163
      %s166 = sadd.s32 %s165, 1
      %p169 = scmp.eq.s32.totalorder %s26, 1
      %p170 = scmp.ne.s32.totalorder %s165, %s167
      %p171 = scmp.eq.s32.totalorder %s26, 0
      %p172 = por %p170, %p171
      %p173 = scmp.ne.s32.totalorder %s165, %s167
      %p174 = scmp.eq.s32.totalorder %s31, 1
      %p175 = por %p173, %p174
      %p176 = scmp.ne.s32.totalorder %s167, %s168
      %p177 = scmp.eq.s32.totalorder %s31, 0
      %p178 = por %p176, %p177
      %p179 = scmp.ne.s32.totalorder %s167, %s168
      %p180 = scmp.eq.s32.totalorder %s32, 1
      %p181 = por %p179, %p180
      %p183 = scmp.ne.s32.totalorder %s168, %s182
      %p184 = scmp.eq.s32.totalorder %s32, 0
      %p185 = por %p183, %p184
      %s187 = sadd.s32 %s186, 1
      %p190 = scmp.eq.s32.totalorder %s26, 1
      %p191 = scmp.ne.s32.totalorder %s186, %s188
      %p192 = scmp.eq.s32.totalorder %s26, 0
      %p193 = por %p191, %p192
      %p194 = scmp.ne.s32.totalorder %s186, %s188
      %p195 = scmp.eq.s32.totalorder %s31, 1
      %p196 = por %p194, %p195
      %p197 = scmp.ne.s32.totalorder %s188, %s189
      %p198 = scmp.eq.s32.totalorder %s31, 0
      %p199 = por %p197, %p198
      %p200 = scmp.ne.s32.totalorder %s188, %s189
      %p201 = scmp.eq.s32.totalorder %s32, 1
      %p202 = por %p200, %p201
      %p204 = scmp.ne.s32.totalorder %s189, %s203
      %p205 = scmp.eq.s32.totalorder %s32, 0
      %p206 = por %p204, %p205
      %s208 = sadd.s32 %s207, 1
      %p211 = scmp.eq.s32.totalorder %s26, 1
      %p212 = scmp.ne.s32.totalorder %s207, %s209
      %p213 = scmp.eq.s32.totalorder %s26, 0
      %p214 = por %p212, %p213
      %p215 = scmp.ne.s32.totalorder %s207, %s209
      %p216 = scmp.eq.s32.totalorder %s31, 1
      %p217 = por %p215, %p216
      %p218 = scmp.ne.s32.totalorder %s209, %s210
      %p219 = scmp.eq.s32.totalorder %s31, 0
      %p220 = por %p218, %p219
      %p221 = scmp.ne.s32.totalorder %s209, %s210
      %p222 = scmp.eq.s32.totalorder %s32, 1
      %p223 = por %p221, %p222
      %p225 = scmp.ne.s32.totalorder %s210, %s224
      %p226 = scmp.eq.s32.totalorder %s32, 0
      %p227 = por %p225, %p226
      %s229 = sadd.s32 %s228, 1
      %p232 = scmp.eq.s32.totalorder %s26, 1
      %p233 = scmp.ne.s32.totalorder %s228, %s230
      %p234 = scmp.eq.s32.totalorder %s26, 0
      %p235 = por %p233, %p234
      %p236 = scmp.ne.s32.totalorder %s228, %s230
      %p237 = scmp.eq.s32.totalorder %s31, 1
      %p238 = por %p236, %p237
      %p239 = scmp.ne.s32.totalorder %s230, %s231
      %p240 = scmp.eq.s32.totalorder %s31, 0
      %p241 = por %p239, %p240
      %p242 = scmp.ne.s32.totalorder %s230, %s231
      %p243 = scmp.eq.s32.totalorder %s32, 1
      %p244 = por %p242, %p243
      %p246 = scmp.ne.s32.totalorder %s231, %s245
      %p247 = scmp.eq.s32.totalorder %s32, 0
      %p248 = por %p246, %p247
      %s250 = sadd.s32 %s249, 1
      %p253 = scmp.eq.s32.totalorder %s26, 1
      %p254 = scmp.ne.s32.totalorder %s249, %s251
      %p255 = scmp.eq.s32.totalorder %s26, 0
      %p256 = por %p254, %p255
      %p257 = scmp.ne.s32.totalorder %s249, %s251
      %p258 = scmp.eq.s32.totalorder %s31, 1
      %p259 = por %p257, %p258
      %p260 = scmp.ne.s32.totalorder %s251, %s252
      %p261 = scmp.eq.s32.totalorder %s31, 0
      %p262 = por %p260, %p261
      %p263 = scmp.ne.s32.totalorder %s251, %s252
      %p264 = scmp.eq.s32.totalorder %s32, 1
      %p265 = por %p263, %p264
      %p267 = scmp.ne.s32.totalorder %s252, %s266
      %p268 = scmp.eq.s32.totalorder %s32, 0
      %p269 = por %p267, %p268
      %s271 = sadd.s32 %s270, 1
      %p274 = scmp.eq.s32.totalorder %s26, 1
      %p275 = scmp.ne.s32.totalorder %s270, %s272
      %p276 = scmp.eq.s32.totalorder %s26, 0
      %p277 = por %p275, %p276
      %p278 = scmp.ne.s32.totalorder %s270, %s272
      %p279 = scmp.eq.s32.totalorder %s31, 1
      %p280 = por %p278, %p279
      %p281 = scmp.ne.s32.totalorder %s272, %s273
      %p282 = scmp.eq.s32.totalorder %s31, 0
      %p283 = por %p281, %p282
      %p284 = scmp.ne.s32.totalorder %s272, %s273
      %p285 = scmp.eq.s32.totalorder %s32, 1
      %p286 = por %p284, %p285
      %p288 = scmp.ne.s32.totalorder %s273, %s287
      %p289 = scmp.eq.s32.totalorder %s32, 0
      %p290 = por %p288, %p289
      %s292 = sadd.s32 %s291, 1
      %p295 = scmp.eq.s32.totalorder %s26, 1
      %p296 = scmp.ne.s32.totalorder %s291, %s293
      %p297 = scmp.eq.s32.totalorder %s26, 0
      %p298 = por %p296, %p297
      %p299 = scmp.ne.s32.totalorder %s291, %s293
      %p300 = scmp.eq.s32.totalorder %s31, 1
      %p301 = por %p299, %p300
      %p302 = scmp.ne.s32.totalorder %s293, %s294
      %p303 = scmp.eq.s32.totalorder %s31, 0
      %p304 = por %p302, %p303
      %p305 = scmp.ne.s32.totalorder %s293, %s294
      %p306 = scmp.eq.s32.totalorder %s32, 1
      %p307 = por %p305, %p306
      %p309 = scmp.ne.s32.totalorder %s294, %s308
      %p310 = scmp.eq.s32.totalorder %s32, 0
      %p311 = por %p309, %p310
      %s313 = sadd.s32 %s312, 1
      %p316 = scmp.eq.s32.totalorder %s26, 1
      %p317 = scmp.ne.s32.totalorder %s312, %s314
      %p318 = scmp.eq.s32.totalorder %s26, 0
      %p319 = por %p317, %p318
      %p320 = scmp.ne.s32.totalorder %s312, %s314
      %p321 = scmp.eq.s32.totalorder %s31, 1
      %p322 = por %p320, %p321
      %p323 = scmp.ne.s32.totalorder %s314, %s315
      %p324 = scmp.eq.s32.totalorder %s31, 0
      %p325 = por %p323, %p324
      %p326 = scmp.ne.s32.totalorder %s314, %s315
      %p327 = scmp.eq.s32.totalorder %s32, 1
      %p328 = por %p326, %p327
      %p330 = scmp.ne.s32.totalorder %s315, %s329
      %p331 = scmp.eq.s32.totalorder %s32, 0
      %p332 = por %p330, %p331
      %s334 = sadd.s32 %s333, 1
      %p337 = scmp.eq.s32.totalorder %s26, 1
      %p338 = scmp.ne.s32.totalorder %s333, %s335
      %p339 = scmp.eq.s32.totalorder %s26, 0
      %p340 = por %p338, %p339
      %p341 = scmp.ne.s32.totalorder %s333, %s335
      %p342 = scmp.eq.s32.totalorder %s31, 1
      %p343 = por %p341, %p342
      %p344 = scmp.ne.s32.totalorder %s335, %s336
      %p345 = scmp.eq.s32.totalorder %s31, 0
      %p346 = por %p344, %p345
      %p347 = scmp.ne.s32.totalorder %s335, %s336
      %p348 = scmp.eq.s32.totalorder %s32, 1
      %p349 = por %p347, %p348
      %p351 = scmp.ne.s32.totalorder %s336, %s350
      %p352 = scmp.eq.s32.totalorder %s32, 0
      %p353 = por %p351, %p352
      %s354 = ssub.s32 %s26, %s33
      %p355 = scmp.eq.s32.totalorder %s354, 0
      %s357 = sadd.s32 %s356, 1
      %s358 = scalar_select %p355, %s356, %s357
      %p361 = pneg %p355
      %p362 = scmp.eq.s32.totalorder %s26, 1
      %p363 = por %p361, %p362
      %p364 = scmp.ne.s32.totalorder %s356, %s359
      %p365 = scmp.eq.s32.totalorder %s26, 0
      %p366 = por %p364, %p365
      %p367 = scmp.ne.s32.totalorder %s356, %s359
      %p368 = scmp.eq.s32.totalorder %s31, 1
      %p369 = por %p367, %p368
      %p370 = scmp.ne.s32.totalorder %s359, %s360
      %p371 = scmp.eq.s32.totalorder %s31, 0
      %p372 = por %p370, %p371
      %p373 = scmp.ne.s32.totalorder %s359, %s360
      %p374 = scmp.eq.s32.totalorder %s32, 1
      %p375 = por %p373, %p374
      %p377 = scmp.ne.s32.totalorder %s360, %s376
      %p378 = scmp.eq.s32.totalorder %s32, 0
      %p379 = por %p377, %p378
      %p380 = scmp.le.s32.totalorder 1, %s26
      %p381 = scmp.lt.s32.totalorder %s26, 3
      %p382 = pnand %p380, %p381
      %p383 = pneg %p382
      // Predicated region
      $region9: #{tpu_custom_call.1} parent=5 // pred_check
        _
      $region10: #{tpu_custom_call.1} parent=5 // pred_check_branch
        %385 = sbr.rel (%p382) target = $region12
      $region11: #{tpu_custom_call.1} parent=5 // pred_region
        %s386 = ssub.s32 %s26, 1
        // Predicated region
        $region13: #{tpu_custom_call.1} parent=11 // pred_check
          %p387 = pneg %p73
        $region14: #{tpu_custom_call.1} parent=11 // pred_check_branch
          %389 = sbr.rel (%p387) target = $region16
        $region15: #{tpu_custom_call.1} parent=11 // pred_region
          _
        $region16: #{tpu_custom_call.1} parent=11 // pred_fallthru
          _
        // Predicated region
        $region17: #{tpu_custom_call.1} parent=11 // pred_check
          %p390 = pneg %p94
        $region18: #{tpu_custom_call.1} parent=11 // pred_check_branch
          %392 = sbr.rel (%p390) target = $region20
        $region19: #{tpu_custom_call.1} parent=11 // pred_region
          _
        $region20: #{tpu_custom_call.1} parent=11 // pred_fallthru
          _
        // Predicated region
        $region21: #{tpu_custom_call.1} parent=11 // pred_check
          %p393 = pneg %p115
        $region22: #{tpu_custom_call.1} parent=11 // pred_check_branch
          %395 = sbr.rel (%p393) target = $region24
        $region23: #{tpu_custom_call.1} parent=11 // pred_region
          _
        $region24: #{tpu_custom_call.1} parent=11 // pred_fallthru
          _
        // Predicated region
        $region25: #{tpu_custom_call.1} parent=11 // pred_check
          %p396 = pneg %p136
        $region26: #{tpu_custom_call.1} parent=11 // pred_check_branch
          %398 = sbr.rel (%p396) target = $region28
        $region27: #{tpu_custom_call.1} parent=11 // pred_region
          _
        $region28: #{tpu_custom_call.1} parent=11 // pred_fallthru
          _
        // Predicated region
        $region29: #{tpu_custom_call.1} parent=11 // pred_check
          %p399 = pneg %p157
        $region30: #{tpu_custom_call.1} parent=11 // pred_check_branch
          %401 = sbr.rel (%p399) target = $region32
        $region31: #{tpu_custom_call.1} parent=11 // pred_region
          _
        $region32: #{tpu_custom_call.1} parent=11 // pred_fallthru
          _
        // Predicated region
        $region33: #{tpu_custom_call.1} parent=11 // pred_check
          %p402 = pneg %p178
        $region34: #{tpu_custom_call.1} parent=11 // pred_check_branch
          %404 = sbr.rel (%p402) target = $region36
        $region35: #{tpu_custom_call.1} parent=11 // pred_region
          _
        $region36: #{tpu_custom_call.1} parent=11 // pred_fallthru
          _
        // Predicated region
        $region37: #{tpu_custom_call.1} parent=11 // pred_check
          %p405 = pneg %p199
        $region38: #{tpu_custom_call.1} parent=11 // pred_check_branch
          %407 = sbr.rel (%p405) target = $region40
        $region39: #{tpu_custom_call.1} parent=11 // pred_region
          _
        $region40: #{tpu_custom_call.1} parent=11 // pred_fallthru
          _
        // Predicated region
        $region41: #{tpu_custom_call.1} parent=11 // pred_check
          %p408 = pneg %p220
        $region42: #{tpu_custom_call.1} parent=11 // pred_check_branch
          %410 = sbr.rel (%p408) target = $region44
        $region43: #{tpu_custom_call.1} parent=11 // pred_region
          _
        $region44: #{tpu_custom_call.1} parent=11 // pred_fallthru
          _
        // Predicated region
        $region45: #{tpu_custom_call.1} parent=11 // pred_check
          %p411 = pneg %p241
        $region46: #{tpu_custom_call.1} parent=11 // pred_check_branch
          %413 = sbr.rel (%p411) target = $region48
        $region47: #{tpu_custom_call.1} parent=11 // pred_region
          _
        $region48: #{tpu_custom_call.1} parent=11 // pred_fallthru
          _
        // Predicated region
        $region49: #{tpu_custom_call.1} parent=11 // pred_check
          %p414 = pneg %p262
        $region50: #{tpu_custom_call.1} parent=11 // pred_check_branch
          %416 = sbr.rel (%p414) target = $region52
        $region51: #{tpu_custom_call.1} parent=11 // pred_region
          _
        $region52: #{tpu_custom_call.1} parent=11 // pred_fallthru
          _
        // Predicated region
        $region53: #{tpu_custom_call.1} parent=11 // pred_check
          %p417 = pneg %p283
        $region54: #{tpu_custom_call.1} parent=11 // pred_check_branch
          %419 = sbr.rel (%p417) target = $region56
        $region55: #{tpu_custom_call.1} parent=11 // pred_region
          _
        $region56: #{tpu_custom_call.1} parent=11 // pred_fallthru
          _
        // Predicated region
        $region57: #{tpu_custom_call.1} parent=11 // pred_check
          %p420 = pneg %p304
        $region58: #{tpu_custom_call.1} parent=11 // pred_check_branch
          %422 = sbr.rel (%p420) target = $region60
        $region59: #{tpu_custom_call.1} parent=11 // pred_region
          _
        $region60: #{tpu_custom_call.1} parent=11 // pred_fallthru
          _
        // Predicated region
        $region61: #{tpu_custom_call.1} parent=11 // pred_check
          %p423 = pneg %p325
        $region62: #{tpu_custom_call.1} parent=11 // pred_check_branch
          %425 = sbr.rel (%p423) target = $region64
        $region63: #{tpu_custom_call.1} parent=11 // pred_region
          _
        $region64: #{tpu_custom_call.1} parent=11 // pred_fallthru
          _
        // Predicated region
        $region65: #{tpu_custom_call.1} parent=11 // pred_check
          %p426 = pneg %p346
        $region66: #{tpu_custom_call.1} parent=11 // pred_check_branch
          %428 = sbr.rel (%p426) target = $region68
        $region67: #{tpu_custom_call.1} parent=11 // pred_region
          _
        $region68: #{tpu_custom_call.1} parent=11 // pred_fallthru
          _
      $region12: #{tpu_custom_call.1} parent=5 // pred_fallthru
        _
      %p429 = scmp.lt.s32.totalorder %s26, 2
      // Predicated region
      $region69: #{tpu_custom_call.1} parent=5 // pred_check
        %p430 = pneg %p429
      $region70: #{tpu_custom_call.1} parent=5 // pred_check_branch
        %432 = sbr.rel (%p430) target = $region72
      $region71: #{tpu_custom_call.1} parent=5 // pred_region
        // Predicated region
        $region73: #{tpu_custom_call.1} parent=71 // pred_check
          %p433 = pneg %p46
        $region74: #{tpu_custom_call.1} parent=71 // pred_check_branch
          %435 = sbr.rel (%p433) target = $region76
        $region75: #{tpu_custom_call.1} parent=71 // pred_region
          %p436 = scmp.lt.s32.totalorder %s26, 1
          %s437 = scalar_select %p436, %s26, 1
          %s438 = smul.addr %s437, 2
          %s439 = smul.addr %s438, 4
          %s440 = scalar_lea.vmem %s0, %s439
        $region76: #{tpu_custom_call.1} parent=71 // pred_fallthru
          _
      $region72: #{tpu_custom_call.1} parent=5 // pred_fallthru
        _
      %p441 = scmp.le.s32.totalorder 1, %s26
      %p442 = scmp.lt.s32.totalorder %s26, 3
      %p443 = pnand %p441, %p442
      %p444 = pneg %p443
      // Predicated region
      $region77: #{tpu_custom_call.1} parent=5 // pred_check
        _
      $region78: #{tpu_custom_call.1} parent=5 // pred_check_branch
        %446 = sbr.rel (%p443) target = $region80
      $region79: #{tpu_custom_call.1} parent=5 // pred_region
        %s447 = ssub.s32 %s26, 1
        %p448 = scmp.lt.s32.totalorder %s31, 1
        %s449 = scalar_select %p448, %s31, 1
        %s450 = smul.addr %s449, 2
        %s451 = smul.addr %s450, 4
        %s452 = scalar_lea.vmem %s0, %s451
        %p453 = pneg %p52
        %p454 = pneg %p49
        %p455 = pneg %p73
        %p456 = pneg %p70
        %p457 = pneg %p94
        %p458 = pneg %p91
        %p459 = pneg %p115
        %p460 = pneg %p112
        %p461 = pneg %p136
        %p462 = pneg %p133
        %p463 = pneg %p157
        %p464 = pneg %p154
        %p465 = pneg %p178
        %p466 = pneg %p175
        %p467 = pneg %p199
        %p468 = pneg %p196
        %p469 = pneg %p220
        %p470 = pneg %p217
        %p471 = pneg %p241
        %p472 = pneg %p238
        %p473 = pneg %p262
        %p474 = pneg %p259
        %p475 = pneg %p283
        %p476 = pneg %p280
        %p477 = pneg %p304
        %p478 = pneg %p301
        %p479 = pneg %p325
        %p480 = pneg %p322
        %p481 = pneg %p346
        %p482 = pneg %p343
        %p483 = pneg %p372
        %p484 = pneg %p369
        %s485 = sand.u32 %s359, 1
        %s486 = scalar_lea.sflag [#allocation4], %s485
        %s487 = sand.u32 %s359, 1
        %s488 = smul.addr %s487, 8
        %s489 = scalar_lea.vmem [#allocation3], %s488
        %p490 = scmp.lt.s32.totalorder %s31, 1
        %s491 = scalar_select %p490, %s31, 1
        %s492 = smul.addr %s491, 2
        %s493 = smul.addr %s492, 4
        %s494 = scalar_lea.vmem %s0, %s493
        %v495 = vld [vmem:[%s494] sm:$0xff]
        %v496 = vld [vmem:[%s1] sm:$0xff]
        %v497 = vld [vmem:[%s1 + $0x8] sm:$0xff]
        %v498 = vld [vmem:[%s1 + $0x10] sm:$0xff]
        %500 = vset.pattern.permute.xlu0 0
        %501 = vperm.xlu0 %500, %v496
        %v502 = vpop.permute.xlu0 %501
        %505 = vset.pattern.permute.xlu0 0
        %506 = vperm.xlu0 %505, %v497
        %v507 = vpop.permute.xlu0 %506
        %510 = vset.pattern.permute.xlu0 0
        %511 = vperm.xlu0 %510, %v498
        %v512 = vpop.permute.xlu0 %511
        %v515 = vlaneseq
        %v516 = vshrl.u32 %v515, 7
        %v517 = vsub.s32 0, %v516
        %v518 = vrot.slane %v495, %v517
        %v519 = vlaneseq
        %v520 = vshrl.u32 %v519, 7
        %v521 = vsub.s32 4, %v520
        %v522 = vrot.slane %v495, %v521
        %v525 = vlaneseq
        %v526 = vshrl.u32 %v525, 7
        %v527 = vsub.s32 0, %v526
        %v528 = vrot.slane %v518, %v527
        %v529 = vlaneseq
        %v530 = vshrl.u32 %v529, 7
        %v531 = vsub.s32 0, %v530
        %v532 = vrot.slane %v522, %v531
        %v533 = vmul.f32 %v502, %v528
        %v534 = vmul.f32 %v502, %v532
        %v535 = vmul.f32 %v507, %v528
        %v536 = vmul.f32 %v507, %v532
        %v537 = vmul.f32 %v512, %v528
        %v538 = vmul.f32 %v512, %v532
        %539 = vset.pattern.permute.xlu0 1
        %540 = vperm.xlu0 %539, %v496
        %v541 = vpop.permute.xlu0 %540
        %543 = vset.pattern.permute.xlu0 1
        %544 = vperm.xlu0 %543, %v497
        %v545 = vpop.permute.xlu0 %544
        %547 = vset.pattern.permute.xlu0 1
        %548 = vperm.xlu0 %547, %v498
        %v549 = vpop.permute.xlu0 %548
        %v551 = vlaneseq
        %v552 = vshrl.u32 %v551, 7
        %v553 = vsub.s32 1, %v552
        %v554 = vrot.slane %v495, %v553
        %v555 = vlaneseq
        %v556 = vshrl.u32 %v555, 7
        %v557 = vsub.s32 5, %v556
        %v558 = vrot.slane %v495, %v557
        %v561 = vlaneseq
        %v562 = vshrl.u32 %v561, 7
        %v563 = vsub.s32 1, %v562
        %v564 = vrot.slane %v554, %v563
        %v565 = vlaneseq
        %v566 = vshrl.u32 %v565, 7
        %v567 = vsub.s32 1, %v566
        %v568 = vrot.slane %v558, %v567
        %v569 = vmul.f32 %v541, %v564
        %v570 = vmul.f32 %v541, %v568
        %v571 = vmul.f32 %v545, %v564
        %v572 = vmul.f32 %v545, %v568
        %v573 = vmul.f32 %v549, %v564
        %v574 = vmul.f32 %v549, %v568
        %v575 = vadd.f32 %v533, %v569
        %v576 = vadd.f32 %v534, %v570
        %v577 = vadd.f32 %v535, %v571
        %v578 = vadd.f32 %v536, %v572
        %v579 = vadd.f32 %v537, %v573
        %v580 = vadd.f32 %v538, %v574
        %581 = vset.pattern.permute.xlu0 2
        %582 = vperm.xlu0 %581, %v496
        %v583 = vpop.permute.xlu0 %582
        %585 = vset.pattern.permute.xlu0 2
        %586 = vperm.xlu0 %585, %v497
        %v587 = vpop.permute.xlu0 %586
        %589 = vset.pattern.permute.xlu0 2
        %590 = vperm.xlu0 %589, %v498
        %v591 = vpop.permute.xlu0 %590
        %v593 = vlaneseq
        %v594 = vshrl.u32 %v593, 7
        %v595 = vsub.s32 2, %v594
        %v596 = vrot.slane %v495, %v595
        %v597 = vlaneseq
        %v598 = vshrl.u32 %v597, 7
        %v599 = vsub.s32 6, %v598
        %v600 = vrot.slane %v495, %v599
        %v603 = vlaneseq
        %v604 = vshrl.u32 %v603, 7
        %v605 = vsub.s32 2, %v604
        %v606 = vrot.slane %v596, %v605
        %v607 = vlaneseq
        %v608 = vshrl.u32 %v607, 7
        %v609 = vsub.s32 2, %v608
        %v610 = vrot.slane %v600, %v609
        %v611 = vmul.f32 %v583, %v606
        %v612 = vmul.f32 %v583, %v610
        %v613 = vmul.f32 %v587, %v606
        %v614 = vmul.f32 %v587, %v610
        %v615 = vmul.f32 %v591, %v606
        %v616 = vmul.f32 %v591, %v610
        %v617 = vadd.f32 %v575, %v611
        %v618 = vadd.f32 %v576, %v612
        %v619 = vadd.f32 %v577, %v613
        %v620 = vadd.f32 %v578, %v614
        %v621 = vadd.f32 %v579, %v615
        %v622 = vadd.f32 %v580, %v616
        %623 = vset.pattern.permute.xlu0 3
        %624 = vperm.xlu0 %623, %v496
        %v625 = vpop.permute.xlu0 %624
        %627 = vset.pattern.permute.xlu0 3
        %628 = vperm.xlu0 %627, %v497
        %v629 = vpop.permute.xlu0 %628
        %631 = vset.pattern.permute.xlu0 3
        %632 = vperm.xlu0 %631, %v498
        %v633 = vpop.permute.xlu0 %632
        %v635 = vlaneseq
        %v636 = vshrl.u32 %v635, 7
        %v637 = vsub.s32 3, %v636
        %v638 = vrot.slane %v495, %v637
        %v639 = vlaneseq
        %v640 = vshrl.u32 %v639, 7
        %v641 = vsub.s32 7, %v640
        %v642 = vrot.slane %v495, %v641
        %v645 = vlaneseq
        %v646 = vshrl.u32 %v645, 7
        %v647 = vsub.s32 3, %v646
        %v648 = vrot.slane %v638, %v647
        %v649 = vlaneseq
        %v650 = vshrl.u32 %v649, 7
        %v651 = vsub.s32 3, %v650
        %v652 = vrot.slane %v642, %v651
        %v653 = vmul.f32 %v625, %v648
        %v654 = vmul.f32 %v625, %v652
        %v655 = vmul.f32 %v629, %v648
        %v656 = vmul.f32 %v629, %v652
        %v657 = vmul.f32 %v633, %v648
        %v658 = vmul.f32 %v633, %v652
        %v659 = vadd.f32 %v617, %v653
        %v660 = vadd.f32 %v618, %v654
        %v661 = vadd.f32 %v619, %v655
        %v662 = vadd.f32 %v620, %v656
        %v663 = vadd.f32 %v621, %v657
        %v664 = vadd.f32 %v622, %v658
        %v665 = vld [vmem:[%s2] sm:$0xff]
        %v666 = vld [vmem:[%s2 + $0x8] sm:$0xff]
        %v667 = vld [vmem:[%s2 + $0x10] sm:$0xff]
        %669 = vset.pattern.permute.xlu0 0
        %670 = vperm.xlu0 %669, %v665
        %v671 = vpop.permute.xlu0 %670
        %674 = vset.pattern.permute.xlu0 0
        %675 = vperm.xlu0 %674, %v666
        %v676 = vpop.permute.xlu0 %675
        %679 = vset.pattern.permute.xlu0 0
        %680 = vperm.xlu0 %679, %v667
        %v681 = vpop.permute.xlu0 %680
        %v683 = vmul.f32 %v659, %v671
        %v684 = vmul.f32 %v660, %v671
        %v685 = vmul.f32 %v661, %v676
        %v686 = vmul.f32 %v662, %v676
        %v687 = vmul.f32 %v663, %v681
        %v688 = vmul.f32 %v664, %v681
        %v689 = vld [vmem:[%s3] sm:$0xff]
        %v690 = vld [vmem:[%s3 + $0x8] sm:$0xff]
        %v691 = vld [vmem:[%s3 + $0x10] sm:$0xff]
        %693 = vset.pattern.permute.xlu0 0
        %694 = vperm.xlu0 %693, %v689
        %v695 = vpop.permute.xlu0 %694
        %698 = vset.pattern.permute.xlu0 0
        %699 = vperm.xlu0 %698, %v690
        %v700 = vpop.permute.xlu0 %699
        %703 = vset.pattern.permute.xlu0 0
        %704 = vperm.xlu0 %703, %v691
        %v705 = vpop.permute.xlu0 %704
        %v707 = vadd.f32 %v683, %v695
        %v708 = vadd.f32 %v684, %v695
        %v709 = vadd.f32 %v685, %v700
        %v710 = vadd.f32 %v686, %v700
        %v711 = vadd.f32 %v687, %v705
        %v712 = vadd.f32 %v688, %v705
        %v713 = vxor.u32 %v707, 2147483648
        %v714 = vxor.u32 %v708, 2147483648
        %v715 = vxor.u32 %v709, 2147483648
        %v716 = vxor.u32 %v710, 2147483648
        %v717 = vxor.u32 %v711, 2147483648
        %v718 = vxor.u32 %v712, 2147483648
        %v719 = vmul.f32 %v713, 1.442695
        %v720 = vpow.pop %v719
        %v721 = vmul.f32 %v714, 1.442695
        %v722 = vpow.pop %v721
        %v723 = vmul.f32 %v715, 1.442695
        %v724 = vpow.pop %v723
        %v725 = vmul.f32 %v716, 1.442695
        %v726 = vpow.pop %v725
        %v727 = vmul.f32 %v717, 1.442695
        %v728 = vpow.pop %v727
        %v729 = vmul.f32 %v718, 1.442695
        %v730 = vpow.pop %v729
        %v731 = vadd.f32 %v720, 1.0
        %v732 = vadd.f32 %v722, 1.0
        %v733 = vadd.f32 %v724, 1.0
        %v734 = vadd.f32 %v726, 1.0
        %v735 = vadd.f32 %v728, 1.0
        %v736 = vadd.f32 %v730, 1.0
        %v737 = vrcp.pop %v731
        %v738 = vmul.f32 1.0, %v737
        %v739 = vrcp.pop %v732
        %v740 = vmul.f32 1.0, %v739
        %v741 = vrcp.pop %v733
        %v742 = vmul.f32 1.0, %v741
        %v743 = vrcp.pop %v734
        %v744 = vmul.f32 1.0, %v743
        %v745 = vrcp.pop %v735
        %v746 = vmul.f32 1.0, %v745
        %v747 = vrcp.pop %v736
        %v748 = vmul.f32 1.0, %v747
        %v749 = vmul.f32 %v707, %v738
        %v750 = vmul.f32 %v708, %v740
        %v751 = vmul.f32 %v709, %v742
        %v752 = vmul.f32 %v710, %v744
        %v753 = vmul.f32 %v711, %v746
        %v754 = vmul.f32 %v712, %v748
        %v755 = vld [vmem:[%s4] sm:$0xff]
        %v756 = vld [vmem:[%s4 + $0x8] sm:$0xff]
        %v757 = vld [vmem:[%s4 + $0x10] sm:$0xff]
        %v758 = vld [vmem:[%s5] sm:$0xff]
        %v759 = vld [vmem:[%s5 + $0x8] sm:$0xff]
        %v760 = vld [vmem:[%s5 + $0x10] sm:$0x1]
        %v761 = vld [vmem:[%s5 + $0x18] sm:$0x1]
        %765 = vrot.lane.b32.xlu0 %v750, 17
        %v766 = vpop.permute.xlu0 %765
        %767 = vrot.lane.b32.xlu0 %v752, 17
        %v768 = vpop.permute.xlu0 %767
        %769 = vrot.lane.b32.xlu0 %v754, 17
        %v770 = vpop.permute.xlu0 %769
        %777 = vrot.lane.b32.xlu0 %v749, 17
        %v778 = vpop.permute.xlu0 %777
        %779 = vrot.lane.b32.xlu0 %v751, 17
        %v780 = vpop.permute.xlu0 %779
        %781 = vrot.lane.b32.xlu0 %v753, 17
        %v782 = vpop.permute.xlu0 %781
        %vm783 = vcmask 138240
        %v784 = vsel %vm783, %v778, %v766
        %v785 = vsel %vm783, %v780, %v768
        %v786 = vsel %vm783, %v782, %v770
        %v793 = vsel %vm783, %v766, %v778
        %v794 = vsel %vm783, %v768, %v780
        %v795 = vsel %vm783, %v770, %v782
        %v796 = vlaneseq
        %v797 = vshrl.u32 %v796, 7
        %v798 = vsub.s32 0, %v797
        %v799 = vrot.slane %v758, %v798
        %v800 = vlaneseq
        %v801 = vshrl.u32 %v800, 7
        %v802 = vsub.s32 0, %v801
        %v803 = vrot.slane %v759, %v802
        %v804 = vmul.f32 %v793, %v799
        %v805 = vmul.f32 %v784, %v803
        %v806 = vmul.f32 %v794, %v799
        %v807 = vmul.f32 %v785, %v803
        %v808 = vmul.f32 %v795, %v799
        %v809 = vmul.f32 %v786, %v803
        %811 = vset.pattern.permute.xlu0 0
        %812 = vperm.xlu0 %811, %v755
        %v813 = vpop.permute.xlu0 %812
        %816 = vset.pattern.permute.xlu0 0
        %817 = vperm.xlu0 %816, %v756
        %v818 = vpop.permute.xlu0 %817
        %821 = vset.pattern.permute.xlu0 0
        %822 = vperm.xlu0 %821, %v757
        %v823 = vpop.permute.xlu0 %822
        %v825 = vmul.f32 %v804, %v813
        %v826 = vmul.f32 %v805, %v813
        %v827 = vmul.f32 %v806, %v818
        %v828 = vmul.f32 %v807, %v818
        %v829 = vmul.f32 %v808, %v823
        %v830 = vmul.f32 %v809, %v823
        %v831 = vadd.f32 %v825, 0.0
        %v832 = vadd.f32 %v826, 0.0
        %v833 = vadd.f32 %v827, 0.0
        %v834 = vadd.f32 %v828, 0.0
        %v835 = vadd.f32 %v829, 0.0
        %v836 = vadd.f32 %v830, 0.0
        %837 = vrot.lane.b32.xlu0 %v750, 16
        %v838 = vpop.permute.xlu0 %837
        %839 = vrot.lane.b32.xlu0 %v752, 16
        %v840 = vpop.permute.xlu0 %839
        %841 = vrot.lane.b32.xlu0 %v754, 16
        %v842 = vpop.permute.xlu0 %841
        %846 = vrot.lane.b32.xlu0 %v749, 16
        %v847 = vpop.permute.xlu0 %846
        %848 = vrot.lane.b32.xlu0 %v751, 16
        %v849 = vpop.permute.xlu0 %848
        %850 = vrot.lane.b32.xlu0 %v753, 16
        %v851 = vpop.permute.xlu0 %850
        %vm852 = vcmask 130048
        %v853 = vsel %vm852, %v847, %v838
        %v854 = vsel %vm852, %v849, %v840
        %v855 = vsel %vm852, %v851, %v842
        %v862 = vsel %vm852, %v838, %v847
        %v863 = vsel %vm852, %v840, %v849
        %v864 = vsel %vm852, %v842, %v851
        %v865 = vlaneseq
        %v866 = vshrl.u32 %v865, 7
        %v867 = vsub.s32 1, %v866
        %v868 = vrot.slane %v758, %v867
        %v869 = vlaneseq
        %v870 = vshrl.u32 %v869, 7
        %v871 = vsub.s32 1, %v870
        %v872 = vrot.slane %v759, %v871
        %v873 = vmul.f32 %v862, %v868
        %v874 = vmul.f32 %v853, %v872
        %v875 = vmul.f32 %v863, %v868
        %v876 = vmul.f32 %v854, %v872
        %v877 = vmul.f32 %v864, %v868
        %v878 = vmul.f32 %v855, %v872
        %879 = vset.pattern.permute.xlu0 1
        %880 = vperm.xlu0 %879, %v755
        %v881 = vpop.permute.xlu0 %880
        %883 = vset.pattern.permute.xlu0 1
        %884 = vperm.xlu0 %883, %v756
        %v885 = vpop.permute.xlu0 %884
        %887 = vset.pattern.permute.xlu0 1
        %888 = vperm.xlu0 %887, %v757
        %v889 = vpop.permute.xlu0 %888
        %v891 = vmul.f32 %v873, %v881
        %v892 = vmul.f32 %v874, %v881
        %v893 = vmul.f32 %v875, %v885
        %v894 = vmul.f32 %v876, %v885
        %v895 = vmul.f32 %v877, %v889
        %v896 = vmul.f32 %v878, %v889
        %v897 = vadd.f32 %v831, %v891
        %v898 = vadd.f32 %v832, %v892
        %v899 = vadd.f32 %v833, %v893
        %v900 = vadd.f32 %v834, %v894
        %v901 = vadd.f32 %v835, %v895
        %v902 = vadd.f32 %v836, %v896
        %903 = vrot.lane.b32.xlu0 %v750, 15
        %v904 = vpop.permute.xlu0 %903
        %905 = vrot.lane.b32.xlu0 %v752, 15
        %v906 = vpop.permute.xlu0 %905
        %907 = vrot.lane.b32.xlu0 %v754, 15
        %v908 = vpop.permute.xlu0 %907
        %912 = vrot.lane.b32.xlu0 %v749, 15
        %v913 = vpop.permute.xlu0 %912
        %914 = vrot.lane.b32.xlu0 %v751, 15
        %v915 = vpop.permute.xlu0 %914
        %916 = vrot.lane.b32.xlu0 %v753, 15
        %v917 = vpop.permute.xlu0 %916
        %vm918 = vcmask 121856
        %v919 = vsel %vm918, %v913, %v904
        %v920 = vsel %vm918, %v915, %v906
        %v921 = vsel %vm918, %v917, %v908
        %v928 = vsel %vm918, %v904, %v913
        %v929 = vsel %vm918, %v906, %v915
        %v930 = vsel %vm918, %v908, %v917
        %v931 = vlaneseq
        %v932 = vshrl.u32 %v931, 7
        %v933 = vsub.s32 2, %v932
        %v934 = vrot.slane %v758, %v933
        %v935 = vlaneseq
        %v936 = vshrl.u32 %v935, 7
        %v937 = vsub.s32 2, %v936
        %v938 = vrot.slane %v759, %v937
        %v939 = vmul.f32 %v928, %v934
        %v940 = vmul.f32 %v919, %v938
        %v941 = vmul.f32 %v929, %v934
        %v942 = vmul.f32 %v920, %v938
        %v943 = vmul.f32 %v930, %v934
        %v944 = vmul.f32 %v921, %v938
        %945 = vset.pattern.permute.xlu0 2
        %946 = vperm.xlu0 %945, %v755
        %v947 = vpop.permute.xlu0 %946
        %949 = vset.pattern.permute.xlu0 2
        %950 = vperm.xlu0 %949, %v756
        %v951 = vpop.permute.xlu0 %950
        %953 = vset.pattern.permute.xlu0 2
        %954 = vperm.xlu0 %953, %v757
        %v955 = vpop.permute.xlu0 %954
        %v957 = vmul.f32 %v939, %v947
        %v958 = vmul.f32 %v940, %v947
        %v959 = vmul.f32 %v941, %v951
        %v960 = vmul.f32 %v942, %v951
        %v961 = vmul.f32 %v943, %v955
        %v962 = vmul.f32 %v944, %v955
        %v963 = vadd.f32 %v897, %v957
        %v964 = vadd.f32 %v898, %v958
        %v965 = vadd.f32 %v899, %v959
        %v966 = vadd.f32 %v900, %v960
        %v967 = vadd.f32 %v901, %v961
        %v968 = vadd.f32 %v902, %v962
        %969 = vrot.lane.b32.xlu0 %v750, 1
        %v970 = vpop.permute.xlu0 %969
        %971 = vrot.lane.b32.xlu0 %v752, 1
        %v972 = vpop.permute.xlu0 %971
        %973 = vrot.lane.b32.xlu0 %v754, 1
        %v974 = vpop.permute.xlu0 %973
        %978 = vrot.lane.b32.xlu0 %v749, 1
        %v979 = vpop.permute.xlu0 %978
        %980 = vrot.lane.b32.xlu0 %v751, 1
        %v981 = vpop.permute.xlu0 %980
        %982 = vrot.lane.b32.xlu0 %v753, 1
        %v983 = vpop.permute.xlu0 %982
        %vm984 = vcmask 7168
        %v985 = vsel %vm984, %v979, %v970
        %v986 = vsel %vm984, %v981, %v972
        %v987 = vsel %vm984, %v983, %v974
        %v994 = vsel %vm984, %v970, %v979
        %v995 = vsel %vm984, %v972, %v981
        %v996 = vsel %vm984, %v974, %v983
        %v997 = vlaneseq
        %v998 = vshrl.u32 %v997, 7
        %v999 = vsub.s32 3, %v998
        %v1000 = vrot.slane %v758, %v999
        %v1001 = vlaneseq
        %v1002 = vshrl.u32 %v1001, 7
        %v1003 = vsub.s32 3, %v1002
        %v1004 = vrot.slane %v759, %v1003
        %v1005 = vmul.f32 %v994, %v1000
        %v1006 = vmul.f32 %v985, %v1004
        %v1007 = vmul.f32 %v995, %v1000
        %v1008 = vmul.f32 %v986, %v1004
        %v1009 = vmul.f32 %v996, %v1000
        %v1010 = vmul.f32 %v987, %v1004
        %1011 = vset.pattern.permute.xlu0 3
        %1012 = vperm.xlu0 %1011, %v755
        %v1013 = vpop.permute.xlu0 %1012
        %1015 = vset.pattern.permute.xlu0 3
        %1016 = vperm.xlu0 %1015, %v756
        %v1017 = vpop.permute.xlu0 %1016
        %1019 = vset.pattern.permute.xlu0 3
        %1020 = vperm.xlu0 %1019, %v757
        %v1021 = vpop.permute.xlu0 %1020
        %v1023 = vmul.f32 %v1005, %v1013
        %v1024 = vmul.f32 %v1006, %v1013
        %v1025 = vmul.f32 %v1007, %v1017
        %v1026 = vmul.f32 %v1008, %v1017
        %v1027 = vmul.f32 %v1009, %v1021
        %v1028 = vmul.f32 %v1010, %v1021
        %v1029 = vadd.f32 %v963, %v1023
        %v1030 = vadd.f32 %v964, %v1024
        %v1031 = vadd.f32 %v965, %v1025
        %v1032 = vadd.f32 %v966, %v1026
        %v1033 = vadd.f32 %v967, %v1027
        %v1034 = vadd.f32 %v968, %v1028
        %v1035 = vlaneseq
        %v1036 = vshrl.u32 %v1035, 7
        %v1037 = vsub.s32 4, %v1036
        %v1038 = vrot.slane %v758, %v1037
        %v1039 = vlaneseq
        %v1040 = vshrl.u32 %v1039, 7
        %v1041 = vsub.s32 4, %v1040
        %v1042 = vrot.slane %v759, %v1041
        %v1043 = vmul.f32 %v749, %v1038
        %v1044 = vmul.f32 %v750, %v1042
        %v1045 = vmul.f32 %v751, %v1038
        %v1046 = vmul.f32 %v752, %v1042
        %v1047 = vmul.f32 %v753, %v1038
        %v1048 = vmul.f32 %v754, %v1042
        %1049 = vset.pattern.permute.xlu0 4
        %1050 = vperm.xlu0 %1049, %v755
        %v1051 = vpop.permute.xlu0 %1050
        %1053 = vset.pattern.permute.xlu0 4
        %1054 = vperm.xlu0 %1053, %v756
        %v1055 = vpop.permute.xlu0 %1054
        %1057 = vset.pattern.permute.xlu0 4
        %1058 = vperm.xlu0 %1057, %v757
        %v1059 = vpop.permute.xlu0 %1058
        %v1061 = vmul.f32 %v1043, %v1051
        %v1062 = vmul.f32 %v1044, %v1051
        %v1063 = vmul.f32 %v1045, %v1055
        %v1064 = vmul.f32 %v1046, %v1055
        %v1065 = vmul.f32 %v1047, %v1059
        %v1066 = vmul.f32 %v1048, %v1059
        %v1067 = vadd.f32 %v1029, %v1061
        %v1068 = vadd.f32 %v1030, %v1062
        %v1069 = vadd.f32 %v1031, %v1063
        %v1070 = vadd.f32 %v1032, %v1064
        %v1071 = vadd.f32 %v1033, %v1065
        %v1072 = vadd.f32 %v1034, %v1066
        %1073 = vrot.lane.b32.xlu0 %v749, 127
        %v1074 = vpop.permute.xlu0 %1073
        %1075 = vrot.lane.b32.xlu0 %v750, 127
        %v1076 = vpop.permute.xlu0 %1075
        %1077 = vrot.lane.b32.xlu0 %v751, 127
        %v1078 = vpop.permute.xlu0 %1077
        %1079 = vrot.lane.b32.xlu0 %v752, 127
        %v1080 = vpop.permute.xlu0 %1079
        %1081 = vrot.lane.b32.xlu0 %v753, 127
        %v1082 = vpop.permute.xlu0 %1081
        %1083 = vrot.lane.b32.xlu0 %v754, 127
        %v1084 = vpop.permute.xlu0 %1083
        %vm1085 = vcmask 1039360
        %v1086 = vsel %vm1085, %v1074, %v1076
        %v1087 = vsel %vm1085, %v1078, %v1080
        %v1088 = vsel %vm1085, %v1082, %v1084
        %v1098 = vsel %vm1085, %v1076, %v1074
        %v1099 = vsel %vm1085, %v1080, %v1078
        %v1100 = vsel %vm1085, %v1084, %v1082
        %v1101 = vlaneseq
        %v1102 = vshrl.u32 %v1101, 7
        %v1103 = vsub.s32 5, %v1102
        %v1104 = vrot.slane %v758, %v1103
        %v1105 = vlaneseq
        %v1106 = vshrl.u32 %v1105, 7
        %v1107 = vsub.s32 5, %v1106
        %v1108 = vrot.slane %v759, %v1107
        %v1109 = vmul.f32 %v1086, %v1104
        %v1110 = vmul.f32 %v1098, %v1108
        %v1111 = vmul.f32 %v1087, %v1104
        %v1112 = vmul.f32 %v1099, %v1108
        %v1113 = vmul.f32 %v1088, %v1104
        %v1114 = vmul.f32 %v1100, %v1108
        %1115 = vset.pattern.permute.xlu0 5
        %1116 = vperm.xlu0 %1115, %v755
        %v1117 = vpop.permute.xlu0 %1116
        %1119 = vset.pattern.permute.xlu0 5
        %1120 = vperm.xlu0 %1119, %v756
        %v1121 = vpop.permute.xlu0 %1120
        %1123 = vset.pattern.permute.xlu0 5
        %1124 = vperm.xlu0 %1123, %v757
        %v1125 = vpop.permute.xlu0 %1124
        %v1127 = vmul.f32 %v1109, %v1117
        %v1128 = vmul.f32 %v1110, %v1117
        %v1129 = vmul.f32 %v1111, %v1121
        %v1130 = vmul.f32 %v1112, %v1121
        %v1131 = vmul.f32 %v1113, %v1125
        %v1132 = vmul.f32 %v1114, %v1125
        %v1133 = vadd.f32 %v1067, %v1127
        %v1134 = vadd.f32 %v1068, %v1128
        %v1135 = vadd.f32 %v1069, %v1129
        %v1136 = vadd.f32 %v1070, %v1130
        %v1137 = vadd.f32 %v1071, %v1131
        %v1138 = vadd.f32 %v1072, %v1132
        %1139 = vrot.lane.b32.xlu0 %v749, 113
        %v1140 = vpop.permute.xlu0 %1139
        %1141 = vrot.lane.b32.xlu0 %v750, 113
        %v1142 = vpop.permute.xlu0 %1141
        %1143 = vrot.lane.b32.xlu0 %v751, 113
        %v1144 = vpop.permute.xlu0 %1143
        %1145 = vrot.lane.b32.xlu0 %v752, 113
        %v1146 = vpop.permute.xlu0 %1145
        %1147 = vrot.lane.b32.xlu0 %v753, 113
        %v1148 = vpop.permute.xlu0 %1147
        %1149 = vrot.lane.b32.xlu0 %v754, 113
        %v1150 = vpop.permute.xlu0 %1149
        %vm1151 = vcmask 924672
        %v1152 = vsel %vm1151, %v1140, %v1142
        %v1153 = vsel %vm1151, %v1144, %v1146
        %v1154 = vsel %vm1151, %v1148, %v1150
        %v1164 = vsel %vm1151, %v1142, %v1140
        %v1165 = vsel %vm1151, %v1146, %v1144
        %v1166 = vsel %vm1151, %v1150, %v1148
        %v1167 = vlaneseq
        %v1168 = vshrl.u32 %v1167, 7
        %v1169 = vsub.s32 6, %v1168
        %v1170 = vrot.slane %v758, %v1169
        %v1171 = vlaneseq
        %v1172 = vshrl.u32 %v1171, 7
        %v1173 = vsub.s32 6, %v1172
        %v1174 = vrot.slane %v759, %v1173
        %v1175 = vmul.f32 %v1152, %v1170
        %v1176 = vmul.f32 %v1164, %v1174
        %v1177 = vmul.f32 %v1153, %v1170
        %v1178 = vmul.f32 %v1165, %v1174
        %v1179 = vmul.f32 %v1154, %v1170
        %v1180 = vmul.f32 %v1166, %v1174
        %1181 = vset.pattern.permute.xlu0 6
        %1182 = vperm.xlu0 %1181, %v755
        %v1183 = vpop.permute.xlu0 %1182
        %1185 = vset.pattern.permute.xlu0 6
        %1186 = vperm.xlu0 %1185, %v756
        %v1187 = vpop.permute.xlu0 %1186
        %1189 = vset.pattern.permute.xlu0 6
        %1190 = vperm.xlu0 %1189, %v757
        %v1191 = vpop.permute.xlu0 %1190
        %v1193 = vmul.f32 %v1175, %v1183
        %v1194 = vmul.f32 %v1176, %v1183
        %v1195 = vmul.f32 %v1177, %v1187
        %v1196 = vmul.f32 %v1178, %v1187
        %v1197 = vmul.f32 %v1179, %v1191
        %v1198 = vmul.f32 %v1180, %v1191
        %v1199 = vadd.f32 %v1133, %v1193
        %v1200 = vadd.f32 %v1134, %v1194
        %v1201 = vadd.f32 %v1135, %v1195
        %v1202 = vadd.f32 %v1136, %v1196
        %v1203 = vadd.f32 %v1137, %v1197
        %v1204 = vadd.f32 %v1138, %v1198
        %1205 = vrot.lane.b32.xlu0 %v749, 112
        %v1206 = vpop.permute.xlu0 %1205
        %1207 = vrot.lane.b32.xlu0 %v750, 112
        %v1208 = vpop.permute.xlu0 %1207
        %1209 = vrot.lane.b32.xlu0 %v751, 112
        %v1210 = vpop.permute.xlu0 %1209
        %1211 = vrot.lane.b32.xlu0 %v752, 112
        %v1212 = vpop.permute.xlu0 %1211
        %1213 = vrot.lane.b32.xlu0 %v753, 112
        %v1214 = vpop.permute.xlu0 %1213
        %1215 = vrot.lane.b32.xlu0 %v754, 112
        %v1216 = vpop.permute.xlu0 %1215
        %vm1217 = vcmask 916480
        %v1218 = vsel %vm1217, %v1206, %v1208
        %v1219 = vsel %vm1217, %v1210, %v1212
        %v1220 = vsel %vm1217, %v1214, %v1216
        %v1230 = vsel %vm1217, %v1208, %v1206
        %v1231 = vsel %vm1217, %v1212, %v1210
        %v1232 = vsel %vm1217, %v1216, %v1214
        %v1233 = vlaneseq
        %v1234 = vshrl.u32 %v1233, 7
        %v1235 = vsub.s32 7, %v1234
        %v1236 = vrot.slane %v758, %v1235
        %v1237 = vlaneseq
        %v1238 = vshrl.u32 %v1237, 7
        %v1239 = vsub.s32 7, %v1238
        %v1240 = vrot.slane %v759, %v1239
        %v1241 = vmul.f32 %v1218, %v1236
        %v1242 = vmul.f32 %v1230, %v1240
        %v1243 = vmul.f32 %v1219, %v1236
        %v1244 = vmul.f32 %v1231, %v1240
        %v1245 = vmul.f32 %v1220, %v1236
        %v1246 = vmul.f32 %v1232, %v1240
        %1247 = vset.pattern.permute.xlu0 7
        %1248 = vperm.xlu0 %1247, %v755
        %v1249 = vpop.permute.xlu0 %1248
        %1251 = vset.pattern.permute.xlu0 7
        %1252 = vperm.xlu0 %1251, %v756
        %v1253 = vpop.permute.xlu0 %1252
        %1255 = vset.pattern.permute.xlu0 7
        %1256 = vperm.xlu0 %1255, %v757
        %v1257 = vpop.permute.xlu0 %1256
        %v1259 = vmul.f32 %v1241, %v1249
        %v1260 = vmul.f32 %v1242, %v1249
        %v1261 = vmul.f32 %v1243, %v1253
        %v1262 = vmul.f32 %v1244, %v1253
        %v1263 = vmul.f32 %v1245, %v1257
        %v1264 = vmul.f32 %v1246, %v1257
        %v1265 = vadd.f32 %v1199, %v1259
        %v1266 = vadd.f32 %v1200, %v1260
        %v1267 = vadd.f32 %v1201, %v1261
        %v1268 = vadd.f32 %v1202, %v1262
        %v1269 = vadd.f32 %v1203, %v1263
        %v1270 = vadd.f32 %v1204, %v1264
        %1271 = vrot.lane.b32.xlu0 %v749, 111
        %v1272 = vpop.permute.xlu0 %1271
        %1273 = vrot.lane.b32.xlu0 %v750, 111
        %v1274 = vpop.permute.xlu0 %1273
        %1275 = vrot.lane.b32.xlu0 %v751, 111
        %v1276 = vpop.permute.xlu0 %1275
        %1277 = vrot.lane.b32.xlu0 %v752, 111
        %v1278 = vpop.permute.xlu0 %1277
        %1279 = vrot.lane.b32.xlu0 %v753, 111
        %v1280 = vpop.permute.xlu0 %1279
        %1281 = vrot.lane.b32.xlu0 %v754, 111
        %v1282 = vpop.permute.xlu0 %1281
        %vm1283 = vcmask 908288
        %v1284 = vsel %vm1283, %v1272, %v1274
        %v1285 = vsel %vm1283, %v1276, %v1278
        %v1286 = vsel %vm1283, %v1280, %v1282
        %v1296 = vsel %vm1283, %v1274, %v1272
        %v1297 = vsel %vm1283, %v1278, %v1276
        %v1298 = vsel %vm1283, %v1282, %v1280
        %v1299 = vlaneseq
        %v1300 = vshrl.u32 %v1299, 7
        %v1301 = vsub.s32 0, %v1300
        %v1302 = vrot.slane %v760, %v1301
        %v1303 = vlaneseq
        %v1304 = vshrl.u32 %v1303, 7
        %v1305 = vsub.s32 0, %v1304
        %v1306 = vrot.slane %v761, %v1305
        %v1307 = vmul.f32 %v1284, %v1302
        %v1308 = vmul.f32 %v1296, %v1306
        %v1309 = vmul.f32 %v1285, %v1302
        %v1310 = vmul.f32 %v1297, %v1306
        %v1311 = vmul.f32 %v1286, %v1302
        %v1312 = vmul.f32 %v1298, %v1306
        %1313 = vset.pattern.permute.xlu0 8
        %1314 = vperm.xlu0 %1313, %v755
        %v1315 = vpop.permute.xlu0 %1314
        %1317 = vset.pattern.permute.xlu0 8
        %1318 = vperm.xlu0 %1317, %v756
        %v1319 = vpop.permute.xlu0 %1318
        %1321 = vset.pattern.permute.xlu0 8
        %1322 = vperm.xlu0 %1321, %v757
        %v1323 = vpop.permute.xlu0 %1322
        %v1325 = vmul.f32 %v1307, %v1315
        %v1326 = vmul.f32 %v1308, %v1315
        %v1327 = vmul.f32 %v1309, %v1319
        %v1328 = vmul.f32 %v1310, %v1319
        %v1329 = vmul.f32 %v1311, %v1323
        %v1330 = vmul.f32 %v1312, %v1323
        %v1331 = vadd.f32 %v1265, %v1325
        %v1332 = vadd.f32 %v1266, %v1326
        %v1333 = vadd.f32 %v1267, %v1327
        %v1334 = vadd.f32 %v1268, %v1328
        %v1335 = vadd.f32 %v1269, %v1329
        %v1336 = vadd.f32 %v1270, %v1330
        %v1337 = vld [vmem:[%s6] sm:$0xff]
        %v1338 = vld [vmem:[%s6 + $0x8] sm:$0xff]
        %v1339 = vld [vmem:[%s6 + $0x10] sm:$0xff]
        %1341 = vset.pattern.permute.xlu0 0
        %1342 = vperm.xlu0 %1341, %v1337
        %v1343 = vpop.permute.xlu0 %1342
        %1346 = vset.pattern.permute.xlu0 0
        %1347 = vperm.xlu0 %1346, %v1338
        %v1348 = vpop.permute.xlu0 %1347
        %1351 = vset.pattern.permute.xlu0 0
        %1352 = vperm.xlu0 %1351, %v1339
        %v1353 = vpop.permute.xlu0 %1352
        %v1355 = vmul.f32 %v1331, %v1343
        %v1356 = vmul.f32 %v1332, %v1343
        %v1357 = vmul.f32 %v1333, %v1348
        %v1358 = vmul.f32 %v1334, %v1348
        %v1359 = vmul.f32 %v1335, %v1353
        %v1360 = vmul.f32 %v1336, %v1353
        %v1361 = vld [vmem:[%s7] sm:$0xff]
        %v1362 = vld [vmem:[%s7 + $0x8] sm:$0xff]
        %v1363 = vld [vmem:[%s7 + $0x10] sm:$0xff]
        %1365 = vset.pattern.permute.xlu0 0
        %1366 = vperm.xlu0 %1365, %v1361
        %v1367 = vpop.permute.xlu0 %1366
        %1370 = vset.pattern.permute.xlu0 0
        %1371 = vperm.xlu0 %1370, %v1362
        %v1372 = vpop.permute.xlu0 %1371
        %1375 = vset.pattern.permute.xlu0 0
        %1376 = vperm.xlu0 %1375, %v1363
        %v1377 = vpop.permute.xlu0 %1376
        %v1379 = vadd.f32 %v1355, %v1367
        %v1380 = vadd.f32 %v1356, %v1367
        %v1381 = vadd.f32 %v1357, %v1372
        %v1382 = vadd.f32 %v1358, %v1372
        %v1383 = vadd.f32 %v1359, %v1377
        %v1384 = vadd.f32 %v1360, %v1377
        %v1385 = vxor.u32 %v1379, 2147483648
        %v1386 = vxor.u32 %v1380, 2147483648
        %v1387 = vxor.u32 %v1381, 2147483648
        %v1388 = vxor.u32 %v1382, 2147483648
        %v1389 = vxor.u32 %v1383, 2147483648
        %v1390 = vxor.u32 %v1384, 2147483648
        %v1391 = vmul.f32 %v1385, 1.442695
        %v1392 = vpow.pop %v1391
        %v1393 = vmul.f32 %v1386, 1.442695
        %v1394 = vpow.pop %v1393
        %v1395 = vmul.f32 %v1387, 1.442695
        %v1396 = vpow.pop %v1395
        %v1397 = vmul.f32 %v1388, 1.442695
        %v1398 = vpow.pop %v1397
        %v1399 = vmul.f32 %v1389, 1.442695
        %v1400 = vpow.pop %v1399
        %v1401 = vmul.f32 %v1390, 1.442695
        %v1402 = vpow.pop %v1401
        %v1403 = vadd.f32 %v1392, 1.0
        %v1404 = vadd.f32 %v1394, 1.0
        %v1405 = vadd.f32 %v1396, 1.0
        %v1406 = vadd.f32 %v1398, 1.0
        %v1407 = vadd.f32 %v1400, 1.0
        %v1408 = vadd.f32 %v1402, 1.0
        %v1409 = vrcp.pop %v1403
        %v1410 = vmul.f32 1.0, %v1409
        %v1411 = vrcp.pop %v1404
        %v1412 = vmul.f32 1.0, %v1411
        %v1413 = vrcp.pop %v1405
        %v1414 = vmul.f32 1.0, %v1413
        %v1415 = vrcp.pop %v1406
        %v1416 = vmul.f32 1.0, %v1415
        %v1417 = vrcp.pop %v1407
        %v1418 = vmul.f32 1.0, %v1417
        %v1419 = vrcp.pop %v1408
        %v1420 = vmul.f32 1.0, %v1419
        %v1421 = vmul.f32 %v1379, %v1410
        %v1422 = vmul.f32 %v1380, %v1412
        %v1423 = vmul.f32 %v1381, %v1414
        %v1424 = vmul.f32 %v1382, %v1416
        %v1425 = vmul.f32 %v1383, %v1418
        %v1426 = vmul.f32 %v1384, %v1420
        %v1427 = vadd.f32 %v1421, %v1422
        %1428 = vadd.xlane.f32.xlu0 %v1427
        %v1429 = vpop.xlane.xlu0 %1428
        %v1430 = vadd.f32 %v1423, %v1424
        %1431 = vadd.xlane.f32.xlu0 %v1430
        %v1432 = vpop.xlane.xlu0 %1431
        %v1433 = vadd.f32 %v1425, %v1426
        %1434 = vadd.xlane.f32.xlu0 %v1433
        %v1435 = vpop.xlane.xlu0 %1434
        %v1436 = vmul.f32 %v1429, 0.00390625
        %v1437 = vmul.f32 %v1432, 0.00390625
        %v1438 = vmul.f32 %v1435, 0.00390625
        %v1439 = vld [vmem:[%s8] sm:$0xff]
        %v1440 = vld [vmem:[%s8 + $0x8] sm:$0xff]
        %v1441 = vld [vmem:[%s8 + $0x10] sm:$0xff]
        %v1442 = vmul.f32 %v1439, %v1436
        %v1443 = vmul.f32 %v1440, %v1437
        %v1444 = vmul.f32 %v1441, %v1438
        %v1445 = vsel %vm984, %v1442, 0.0
        %v1446 = vsel %vm984, %v1443, 0.0
        %v1447 = vadd.f32 %v1445, %v1446
        %v1448 = vsel %vm984, %v1444, 0.0
        %v1449 = vadd.f32 %v1447, %v1448
        %v1450 = vrot.slane %v1449, 4
        %v1451 = vadd.f32 %v1449, %v1450
        %v1452 = vrot.slane %v1451, 2
        %v1453 = vadd.f32 %v1451, %v1452
        %v1454 = vrot.slane %v1453, 1
        %v1455 = vadd.f32 %v1453, %v1454
        %v1456 = vld [vmem:[#allocation2] sm:$0x1]
        %v1457 = vadd.f32 %v1455, %v1456
        %v1458 = vxor.u32 %v1457, 2147483648
        %v1459 = vmul.f32 %v1458, 1.442695
        %v1460 = vpow.pop %v1459
        %v1461 = vadd.f32 %v1460, 1.0
        %v1462 = vrcp.pop %v1461
        %v1463 = vmul.f32 1.0, %v1462
        %v1464 = vmul.f32 %v1457, %v1463
        %v1465 = vld [vmem:[%s10] sm:$0xff]
        %v1466 = vld [vmem:[%s10 + $0x8] sm:$0xff]
        %v1467 = vld [vmem:[%s10 + $0x10] sm:$0xff]
        %v1468 = vlaneseq
        %v1469 = vshrl.u32 %v1468, 7
        %v1470 = vsub.s32 0, %v1469
        %v1471 = vrot.slane %v1464, %v1470
        %v1472 = vmul.f32 %v1465, %v1471
        %v1473 = vmul.f32 %v1466, %v1471
        %v1474 = vmul.f32 %v1467, %v1471
        %v1475 = vadd.f32 %v1472, 0.0
        %v1476 = vadd.f32 %v1473, 0.0
        %v1477 = vadd.f32 %v1474, 0.0
        %v1478 = vld [vmem:[%s11] sm:$0xff]
        %v1479 = vld [vmem:[%s11 + $0x8] sm:$0xff]
        %v1480 = vld [vmem:[%s11 + $0x10] sm:$0xff]
        %v1481 = vadd.f32 %v1475, %v1478
        %v1482 = vadd.f32 %v1476, %v1479
        %v1483 = vadd.f32 %v1477, %v1480
        %v1484 = vxor.u32 %v1481, 2147483648
        %v1485 = vxor.u32 %v1482, 2147483648
        %v1486 = vxor.u32 %v1483, 2147483648
        %v1487 = vmul.f32 %v1484, 1.442695
        %v1488 = vpow.pop %v1487
        %v1489 = vmul.f32 %v1485, 1.442695
        %v1490 = vpow.pop %v1489
        %v1491 = vmul.f32 %v1486, 1.442695
        %v1492 = vpow.pop %v1491
        %v1493 = vadd.f32 %v1488, 1.0
        %v1494 = vadd.f32 %v1490, 1.0
        %v1495 = vadd.f32 %v1492, 1.0
        %v1496 = vrcp.pop %v1493
        %v1497 = vmul.f32 1.0, %v1496
        %v1498 = vrcp.pop %v1494
        %v1499 = vmul.f32 1.0, %v1498
        %v1500 = vrcp.pop %v1495
        %v1501 = vmul.f32 1.0, %v1500
        %v1502 = vld [vmem:[%s12] sm:$0xf]
        %1504 = vset.pattern.permute.xlu0 0
        %1505 = vperm.xlu0 %1504, %v1497
        %v1506 = vpop.permute.xlu0 %1505
        %1509 = vset.pattern.permute.xlu0 0
        %1510 = vperm.xlu0 %1509, %v1499
        %v1511 = vpop.permute.xlu0 %1510
        %1514 = vset.pattern.permute.xlu0 0
        %1515 = vperm.xlu0 %1514, %v1501
        %v1516 = vpop.permute.xlu0 %1515
        %v1518 = vmul.f32 %v1421, %v1506
        %v1519 = vmul.f32 %v1422, %v1506
        %v1520 = vmul.f32 %v1423, %v1511
        %v1521 = vmul.f32 %v1424, %v1511
        %v1522 = vmul.f32 %v1425, %v1516
        %v1523 = vmul.f32 %v1426, %v1516
        %vm1524 = vcmask 195584
        %v1526 = vsel %vm1524, %v1502, 0
        %1528 = vmatprep.subr.mxu0 %v1519
        %1529 = vmatpush1.msra.mxu0 %v1518
        %1530 = vmatprep.subr.mxu0 %v1521
        %1531 = vmatpush1.msra.mxu0 %v1520
        %1532 = vmatprep.subr.mxu0 %v1523
        %1533 = vmatpush1.msra.mxu0 %v1522
        %1534 = vmatprep.subr.mxu0 0.0
        %1535 = vmatpush1.msra.mxu0 0.0
        %1536 = vmatprep.subr.mxu0 0.0
        %1537 = vmatpush1.msra.mxu0 0.0
        %1538 = vmatprep.subr.mxu0 0.0
        %1539 = vmatpush1.msra.mxu0 0.0
        %1540 = vmatprep.subr.mxu0 0.0
        %1541 = vmatpush1.msra.mxu0 0.0
        %1542 = vmatprep.subr.mxu0 0.0
        %1543 = vmatpush1.msra.mxu0 0.0
        %1544 = vmatprep.subr.mxu0 0.0
        %1545 = vmatpush1.msra.mxu0 0.0
        %1546 = vmatprep.subr.mxu0 0.0
        %1547 = vmatpush1.msra.mxu0 0.0
        %1548 = vmatprep.subr.mxu0 0.0
        %1549 = vmatpush1.msra.mxu0 0.0
        %1550 = vmatprep.subr.mxu0 0.0
        %1551 = vmatpush1.msra.mxu0 0.0
        %1552 = vmatprep.subr.mxu0 0.0
        %1553 = vmatpush1.msra.mxu0 0.0
        %1554 = vmatprep.subr.mxu0 0.0
        %1555 = vmatpush1.msra.mxu0 0.0
        %1556 = vmatprep.subr.mxu0 0.0
        %1557 = vmatpush1.msra.mxu0 0.0
        %1558 = vmatprep.subr.mxu0 0.0
        %1559 = vmatpush1.msra.mxu0 0.0
        %1560 = vmatprep.subr.mxu0 0.0
        %1561 = vmatpush1.msra.mxu0 0.0
        %1562 = vmatprep.subr.mxu0 0.0
        %1563 = vmatpush1.msra.mxu0 0.0
        %1564 = vmatprep.subr.mxu0 0.0
        %1565 = vmatpush1.msra.mxu0 0.0
        %1566 = vmatprep.subr.mxu0 0.0
        %1567 = vmatpush1.msra.mxu0 0.0
        %1568 = vmatprep.subr.mxu0 0.0
        %1569 = vmatpush1.msra.mxu0 0.0
        %1570 = vmatprep.subr.mxu0 0.0
        %1571 = vmatpush1.msra.mxu0 0.0
        %1572 = vmatprep.subr.mxu0 0.0
        %1573 = vmatpush1.msra.mxu0 0.0
        %1574 = vmatprep.subr.mxu0 0.0
        %1575 = vmatpush1.msra.mxu0 0.0
        %1576 = vmatprep.subr.mxu0 0.0
        %1577 = vmatpush1.msra.mxu0 0.0
        %1578 = vmatprep.subr.mxu0 0.0
        %1579 = vmatpush1.msra.mxu0 0.0
        %1580 = vmatprep.subr.mxu0 0.0
        %1581 = vmatpush1.msra.mxu0 0.0
        %1582 = vmatprep.subr.mxu0 0.0
        %1583 = vmatpush1.msra.mxu0 0.0
        %1584 = vmatprep.subr.mxu0 0.0
        %1585 = vmatpush1.msra.mxu0 0.0
        %1586 = vmatprep.subr.mxu0 0.0
        %1587 = vmatpush1.msra.mxu0 0.0
        %1588 = vmatprep.subr.mxu0 0.0
        %1589 = vmatpush1.msra.mxu0 0.0
        %1590 = vmatprep.subr.mxu0 0.0
        %1591 = vmatpush1.msra.mxu0 0.0
        %1592 = vmatprep.mubr.f32.mxu0 0.0
        %1593 = vmatmul.mubr.f32.gmra.mrb[0].mxu0 %v1526
        %v1594 = vpop.f32.mrb[0].mxu0
        %v1595 = vadd.f32 0.0, %v1594
        %v1596 = vpop.f32.mrb[0].mxu0
        %v1597 = vadd.f32 0.0, %v1596
        %1598 = vdwg.mxu0
        %v1599 = vld [vmem:[%s13] sm:$0xf]
        %1601 = vset.pattern.permute.xlu0 0
        %1602 = vperm.xlu0 %1601, %v1599
        %v1603 = vpop.permute.xlu0 %1602
        %v1605 = vmul.f32 %v1595, %v1603
        %v1606 = vmul.f32 %v1597, %v1603
        %v1607 = vld [vmem:[%s14] sm:$0xf]
        %1609 = vset.pattern.permute.xlu0 0
        %1610 = vperm.xlu0 %1609, %v1607
        %v1611 = vpop.permute.xlu0 %1610
        %v1613 = vadd.f32 %v1605, %v1611
        %v1614 = vadd.f32 %v1606, %v1611
        %v1615 = vcombine.high %v495, %v495
        %v1617 = vadd.f32 %v1613, %v495
        %v1618 = vadd.f32 %v1614, %v1615
        %v1621 = vcombine.low %v1617, %v1618
        %1623 = vst [vmem:[%s489] sm:$0xff] %v1621
        %s1624 = sand.u32 %s359, 1
        %s1625 = scalar_lea.sflag [#allocation4], %s1624
        %s1626 = sand.u32 %s359, 1
        %s1627 = smul.addr %s1626, 8
        %s1628 = scalar_lea.vmem [#allocation3], %s1627
        // Predicated region
        $region81: #{tpu_custom_call.1} parent=79 // pred_check
          %p1629 = pneg %p369
        $region82: #{tpu_custom_call.1} parent=79 // pred_check_branch
          %1631 = sbr.rel (%p1629) target = $region84
        $region83: #{tpu_custom_call.1} parent=79 // pred_region
          %s1633 = ssub.s32 128, 128
          %1634 = vsyncadd %s1625, %s1633
          %s1635 = smul.addr %s31, 2
          %s1636 = smul.addr %s1635, 64
          %s1637 = scalar_lea.hbm %s15, %s1636
          %s1639 = sshll.u32 %s1628, 4
          %s1640 = int_to_ptr.vmem [resolvable:$true] %s1639
          %1642 = dma.vmem_to_hbm [thread:$0]  %s1640, 128, %s1637, %s1625
        $region84: #{tpu_custom_call.1} parent=79 // pred_fallthru
          _
      $region80: #{tpu_custom_call.1} parent=5 // pred_fallthru
        _
      %p1643 = scmp.le.s32.totalorder 2, %s26
      // Predicated region
      $region85: #{tpu_custom_call.1} parent=5 // pred_check
        %p1644 = pneg %p1643
      $region86: #{tpu_custom_call.1} parent=5 // pred_check_branch
        %1646 = sbr.rel (%p1644) target = $region88
      $region87: #{tpu_custom_call.1} parent=5 // pred_region
        %s1647 = ssub.s32 %s26, 2
        // Predicated region
        $region89: #{tpu_custom_call.1} parent=87 // pred_check
          %p1648 = pneg %p375
        $region90: #{tpu_custom_call.1} parent=87 // pred_check_branch
          %1650 = sbr.rel (%p1648) target = $region92
        $region91: #{tpu_custom_call.1} parent=87 // pred_region
          %s1651 = sand.u32 %s360, 1
          %s1652 = scalar_lea.sflag [#allocation4], %s1651
          %s1653 = sand.u32 %s360, 1
          %s1654 = smul.addr %s1653, 8
          %s1655 = scalar_lea.vmem [#allocation3], %s1654
          %1656 = dma.done %s1652, 128
        $region92: #{tpu_custom_call.1} parent=87 // pred_fallthru
          _
      $region88: #{tpu_custom_call.1} parent=5 // pred_fallthru
        _
    $region6: #{tpu_custom_call.1} parent=1 // loop_footer
      %s30 = sadd.s32 1, %s26
    $region7: #{tpu_custom_call.1} parent=1 // loop_footer_branch
      %25 = sbr.rel target = $region3
    $region8: #{tpu_custom_call.1} parent=1 // loop_exit
      _
    %1657 = vsyncpa [#allocation4], 1
    %s1658 = scalar_lea.sflag [#allocation4], 1
    %1659 = vsyncpa %s1658, 1

</llo_original>
